<compile_context>
chip_gen: v7x
topology: tpu7x:2x2x1
jax: 0.10.0
libtpu: 0.0.40
codegen_flags: <defaults>
</compile_context>

<pallas_src>
import functools

import jax
import jax.numpy as jnp
from jax import lax
from jax.experimental import pallas as pl
from jax.experimental.pallas import tpu as pltpu


def sam_kernel(x_ref, wq_ref, bq_ref, wk_ref, bk_ref, wv_ref, bv_ref,
               gamma_ref, out_ref, q_scr, k_scr, v_scr, *, use_bf16_exp):
    """One (batch, q-tile) grid step.

    x_ref   : (1, HW, C)  bf16, full spatial map of this batch element
    wq/wk   : (C, C8)     bf16 1x1 conv1/conv2 weights (transposed)
    bq/bk   : (1, C8)     f32 biases
    wv_ref  : (C, C)      bf16 conv3 weights (transposed)
    bv_ref  : (1, C)      f32 bias
    gamma   : (1, 1)      f32 SMEM scalar
    out_ref : (1, TQ, C)  output query tile
    q/k/v scratch: bf16 projections, computed once per batch (qi == 0).
    """
    qi = pl.program_id(1)
    TQ = out_ref.shape[1]

    # ---- Projections for the whole spatial map, once per batch element. ----
    # NOTE: correctness relies on grid axis 1 staying "arbitrary" (sequential).
    @pl.when(qi == 0)
    def _():
        x_full = x_ref[0]                                            # (HW, C) bf16
        q = jnp.dot(x_full, wq_ref[...],
                    preferred_element_type=jnp.float32) + bq_ref[...]   # (HW, C8)
        k = jnp.dot(x_full, wk_ref[...],
                    preferred_element_type=jnp.float32) + bk_ref[...]   # (HW, C8)
        v = jnp.dot(x_full, wv_ref[...],
                    preferred_element_type=jnp.float32) + bv_ref[...]   # (HW, C)
        q_scr[...] = q.astype(jnp.bfloat16)
        k_scr[...] = k.astype(jnp.bfloat16)
        v_scr[...] = v.astype(jnp.bfloat16)

    # ---- Flash-style query tile: scores vs all keys, softmax, aggregate. ----
    start = pl.multiple_of(qi * TQ, TQ)
    q = q_scr[pl.ds(start, TQ), :]                                   # (TQ, C8) bf16

    # q @ k^T without materializing a transpose (contract on the C8 axis);
    # same NT pattern as the documented flash-attention kernel.
    s = lax.dot_general(q, k_scr[...],
                        dimension_numbers=(((1,), (1,)), ((), ())),
                        preferred_element_type=jnp.float32)          # (TQ, HW) f32

    m = jnp.max(s, axis=-1, keepdims=True)
    if use_bf16_exp:
        # v6e/v7x: bf16 exp on the EUP (half the EUP work) and p is already
        # bf16 for the p@v MXU matmul (saves a full (TQ,HW) cast pass).
        p = jnp.exp((s - m).astype(jnp.bfloat16))                    # (TQ, HW) bf16
        denom = jnp.sum(p.astype(jnp.float32), axis=-1, keepdims=True)
        p_mm = p
    else:
        # v5e: no bf16 EUP/VPU path -> keep exp/sum in f32.
        p = jnp.exp(s - m)                                           # (TQ, HW) f32
        denom = jnp.sum(p, axis=-1, keepdims=True)
        p_mm = p.astype(jnp.bfloat16)

    refine = jnp.dot(p_mm, v_scr[...],
                     preferred_element_type=jnp.float32)             # (TQ, C) f32

    # Deferred softmax normalization folded together with gamma (EUP recip).
    gamma = gamma_ref[0, 0]
    scale = gamma * pl.reciprocal(denom, approx=True)                # (TQ, 1)

    x_tile = x_ref[0, pl.ds(start, TQ), :].astype(jnp.float32)       # (TQ, C)
    out_ref[0] = (scale * refine + x_tile).astype(out_ref.dtype)


def _pick_q_tile(HW, target):
    """Largest multiple of 8 that divides HW and is <= target (else HW)."""
    if HW <= target:
        return HW
    tq = (min(target, HW) // 8) * 8
    while tq >= 8:
        if HW % tq == 0:
            return tq
        tq -= 8
    return HW


def _vmem_capacity_bytes():
    """Physical VMEM of the current chip; conservative fallback if unknown."""
    try:
        info = pltpu.get_tpu_info()
        cap = int(getattr(info, "vmem_capacity_bytes", 0))
        if cap > 0:
            return cap
    except Exception:
        pass
    return 64 * 2**20   # v7x per-TensorCore (smallest current generation)


def _bf16_eup_available():
    """True on v6e/v7x (bf16 EUP/VPU); False on v5e/v5p and older."""
    try:
        kind = jax.devices()[0].device_kind.lower()
    except Exception:
        return False
    if "tpu" not in kind:
        return False
    return not any(old in kind for old in ("v2", "v3", "v4", "v5"))


def sa_module_forward(feat_map, params, *, q_tile_target=None, use_bf16_exp=None):
    """feat_map: (B, C, H, W) float32 (PyTorch NCHW layout)."""
    B, C, H, W = feat_map.shape
    HW = H * W
    C8 = C // 8
    assert C8 >= 1, "num_channels must be >= 8"

    vmem_cap = _vmem_capacity_bytes()
    if q_tile_target is None:
        # Smaller score tiles on v7x (64 MiB VMEM); larger on v5e/v6e (128 MiB).
        q_tile_target = 256 if vmem_cap <= (64 * 2**20) else 512
    if use_bf16_exp is None:
        use_bf16_exp = _bf16_eup_available()

    TQ = _pick_q_tile(HW, q_tile_target)
    n_q = HW // TQ

    # NCHW -> (B, HW, C): channels on the fast (lane) axis. Resident x is bf16
    # to halve the per-batch VMEM footprint and the batch-boundary DMA.
    x = jnp.transpose(feat_map.reshape(B, C, HW), (0, 2, 1)).astype(jnp.bfloat16)

    # Separate q/k projections: avoids splitting a fused (HW, 2*C8) result at a
    # non-128 lane boundary (cross-lane relayout when C8 < 128).
    wq = params["w1"].T.astype(jnp.bfloat16)              # (C, C8)
    bq = params["b1"].reshape(1, C8).astype(jnp.float32)
    wk = params["w2"].T.astype(jnp.bfloat16)              # (C, C8)
    bk = params["b2"].reshape(1, C8).astype(jnp.float32)
    wv = params["w3"].T.astype(jnp.bfloat16)              # (C, C)
    bv = params["b3"].reshape(1, C).astype(jnp.float32)
    gamma = params["gamma"].reshape(1, 1).astype(jnp.float32)

    # VMEM budget estimate (bytes); generation-aware cap at 85% of physical.
    f32b, bf16b = 4, 2
    vmem_est = (
        2 * HW * C * bf16b                                        # resident x (dbl-buffered)
        + 2 * TQ * C * f32b                                       # output tiles (dbl-buffered)
        + 2 * ((2 * C * C8 + C * C) * bf16b + (2 * C8 + 2 * C) * f32b)  # weights / biases
        + HW * (2 * C8 + C) * bf16b                               # q/k/v scratch
        + 4 * TQ * HW * f32b                                      # score/exp temps + slack
    )
    vmem_limit = int(min(0.85 * vmem_cap, max(vmem_est + (8 << 20), 32 << 20)))

    flops = 2 * B * (2 * HW * C * C8 + HW * C * C + HW * HW * C8 + HW * HW * C)
    bytes_accessed = (
        B * HW * C * (bf16b + f32b)                               # x read + out write
        + (2 * C * C8 + C * C) * bf16b + (2 * C8 + C) * f32b      # weights / biases
        + B * HW * (2 * C8 + C) * bf16b                           # q/k/v scratch traffic
    )
    cost = pl.CostEstimate(flops=flops, transcendentals=B * HW * HW,
                           bytes_accessed=bytes_accessed)

    kernel = functools.partial(sam_kernel, use_bf16_exp=bool(use_bf16_exp))

    out = pl.pallas_call(
        kernel,
        out_shape=jax.ShapeDtypeStruct((B, HW, C), feat_map.dtype),
        grid_spec=pltpu.PrefetchScalarGridSpec(
            num_scalar_prefetch=0,
            grid=(B, n_q),
            in_specs=[
                pl.BlockSpec((1, HW, C), lambda b, q: (b, 0, 0)),    # x (resident per b)
                pl.BlockSpec((C, C8), lambda b, q: (0, 0)),          # W_q
                pl.BlockSpec((1, C8), lambda b, q: (0, 0)),          # b_q
                pl.BlockSpec((C, C8), lambda b, q: (0, 0)),          # W_k
                pl.BlockSpec((1, C8), lambda b, q: (0, 0)),          # b_k
                pl.BlockSpec((C, C), lambda b, q: (0, 0)),           # W_v
                pl.BlockSpec((1, C), lambda b, q: (0, 0)),           # b_v
                pl.BlockSpec(memory_space=pltpu.MemorySpace.SMEM),   # gamma
            ],
            out_specs=pl.BlockSpec((1, TQ, C), lambda b, q: (b, q, 0)),
            scratch_shapes=[
                pltpu.VMEM((HW, C8), jnp.bfloat16),   # q projection
                pltpu.VMEM((HW, C8), jnp.bfloat16),   # k projection
                pltpu.VMEM((HW, C), jnp.bfloat16),    # v projection
            ],
        ),
        compiler_params=pltpu.CompilerParams(
            dimension_semantics=("parallel", "arbitrary"),
            vmem_limit_bytes=vmem_limit,
        ),
        cost_estimate=cost,
    )(x, wq, bq, wk, bk, wv, bv, gamma)

    # (B, HW, C) -> NCHW
    return jnp.transpose(out, (0, 2, 1)).reshape(B, C, H, W)


def sa_module_reference(feat_map, params):
    """Pure-JAX f32 reference mirroring the PyTorch forward exactly."""
    B, C, H, W = feat_map.shape
    HW = H * W

    def conv1x1(x, w, b):
        return jnp.einsum("bchw,oc->bohw", x, w) + b[None, :, None, None]

    q = conv1x1(feat_map, params["w1"], params["b1"]).reshape(B, -1, HW)
    q = jnp.transpose(q, (0, 2, 1))                                       # (B, HW, C8)
    k = conv1x1(feat_map, params["w2"], params["b2"]).reshape(B, -1, HW)  # (B, C8, HW)
    rel = jnp.einsum("bpc,bcj->bpj", q, k)                                # (B, HW, HW)
    attn = jax.nn.softmax(rel, axis=-1)
    v = conv1x1(feat_map, params["w3"], params["b3"]).reshape(B, C, HW)
    refine = jnp.einsum("bcj,bpj->bcp", v, attn).reshape(B, C, H, W)
    return params["gamma"][0] * refine + feat_map


if __name__ == "__main__":
    # Small shapes consistent with the module (num_channels divisible by 8).
    B, C, H, W = 2, 16, 16, 16
    C8 = C // 8

    key = jax.random.PRNGKey(0)
    k_x, k_w1, k_b1, k_w2, k_b2, k_w3, k_b3 = jax.random.split(key, 7)

    feat_map = jax.random.normal(k_x, (B, C, H, W), dtype=jnp.float32)

    # NOTE: the PyTorch module initializes gamma to 0; we use a nonzero gamma
    # so the attention path is actually exercised numerically.
    params = {
        "w1": 0.1 * jax.random.normal(k_w1, (C8, C), dtype=jnp.float32),
        "b1": 0.1 * jax.random.normal(k_b1, (C8,), dtype=jnp.float32),
        "w2": 0.1 * jax.random.normal(k_w2, (C8, C), dtype=jnp.float32),
        "b2": 0.1 * jax.random.normal(k_b2, (C8,), dtype=jnp.float32),
        "w3": 0.1 * jax.random.normal(k_w3, (C, C), dtype=jnp.float32),
        "b3": 0.1 * jax.random.normal(k_b3, (C,), dtype=jnp.float32),
        "gamma": jnp.array([0.5], dtype=jnp.float32),
    }

    # q_tile_target=128 so the flash-style q-tiling path (2 tiles) is exercised.
    out = jax.block_until_ready(
        sa_module_forward(feat_map, params, q_tile_target=128))
    ref = jax.block_until_ready(sa_module_reference(feat_map, params))

    assert out.shape == (B, C, H, W), out.shape
    max_err = float(jnp.max(jnp.abs(out - ref)))
    # bf16 MXU operands / bf16 resident x (f32 accumulation) + approx
    # reciprocal -> bf16-level tolerance.
    assert jnp.allclose(out, ref, atol=3e-2, rtol=3e-2), max_err

    print("KERNEL_OK")
</pallas_src>

<mosaic_0001>
module attributes {stable_mosaic.version = 11 : i64} {
  func.func @sam_kernel(%arg0: i32, %arg1: i32, %arg2: memref<1x256x16xbf16, #tpu.memory_space<vmem>>, %arg3: memref<16x2xbf16, #tpu.memory_space<vmem>>, %arg4: memref<1x2xf32, #tpu.memory_space<vmem>>, %arg5: memref<16x2xbf16, #tpu.memory_space<vmem>>, %arg6: memref<1x2xf32, #tpu.memory_space<vmem>>, %arg7: memref<16x16xbf16, #tpu.memory_space<vmem>>, %arg8: memref<1x16xf32, #tpu.memory_space<vmem>>, %arg9: memref<1x1xf32, #tpu.memory_space<smem>>, %arg10: memref<1x128x16xf32, #tpu.memory_space<vmem>>, %arg11: memref<256x2xbf16, #tpu.memory_space<vmem>>, %arg12: memref<256x2xbf16, #tpu.memory_space<vmem>>, %arg13: memref<256x16xbf16, #tpu.memory_space<vmem>>) attributes {dimension_semantics = [#tpu.dimension_semantics<parallel>, #tpu.dimension_semantics<arbitrary>], iteration_bounds = array<i64: 2, 2>, scalar_prefetch = 0 : i64, scratch_operands = 3 : i64, tpu.core_type = #tpu.core_type<tc>, window_params = [{transform_indices = @transform_0, window_bounds = array<i64: 1, 256, 16>}, {pipeline_mode = #tpu.pipeline_mode<synchronous>, transform_indices = @transform_1, window_bounds = array<i64: 16, 2>}, {pipeline_mode = #tpu.pipeline_mode<synchronous>, transform_indices = @transform_2, window_bounds = array<i64: 1, 2>}, {pipeline_mode = #tpu.pipeline_mode<synchronous>, transform_indices = @transform_3, window_bounds = array<i64: 16, 2>}, {pipeline_mode = #tpu.pipeline_mode<synchronous>, transform_indices = @transform_4, window_bounds = array<i64: 1, 2>}, {pipeline_mode = #tpu.pipeline_mode<synchronous>, transform_indices = @transform_5, window_bounds = array<i64: 16, 16>}, {pipeline_mode = #tpu.pipeline_mode<synchronous>, transform_indices = @transform_6, window_bounds = array<i64: 1, 16>}, {transform_indices = @transform_7, window_bounds = array<i64: 1, 1>}, {transform_indices = @transform_8, window_bounds = array<i64: 1, 128, 16>}]} {
    %c0_i32 = arith.constant 0 : i32
    %0 = arith.cmpi eq, %arg1, %c0_i32 : i32
    %1 = arith.extui %0 : i1 to i32
    %c0_i32_0 = arith.constant 0 : i32
    %2 = arith.cmpi ne, %1, %c0_i32_0 : i32
    scf.if %2 {
      %c0_15 = arith.constant 0 : index
      %c0_16 = arith.constant 0 : index
      %c0_17 = arith.constant 0 : index
      %33 = vector.load %arg2[%c0_15, %c0_16, %c0_17] : memref<1x256x16xbf16, #tpu.memory_space<vmem>>, vector<1x256x16xbf16>
      %34 = vector.shape_cast %33 : vector<1x256x16xbf16> to vector<256x16xbf16>
      %c0_18 = arith.constant 0 : index
      %c0_19 = arith.constant 0 : index
      %35 = vector.load %arg3[%c0_18, %c0_19] : memref<16x2xbf16, #tpu.memory_space<vmem>>, vector<16x2xbf16>
      %cst_20 = arith.constant dense<0.000000e+00> : vector<256x2xf32>
      %36 = tpu.matmul %34, %35, %cst_20 {dimension_numbers = #tpu.dot_dimension_numbers<[1], [0], [0], [1], [0, 0, 1, 1], [], []>} : vector<256x16xbf16>, vector<16x2xbf16>, vector<256x2xf32> -> vector<256x2xf32>
      %c0_21 = arith.constant 0 : index
      %c0_22 = arith.constant 0 : index
      %37 = vector.load %arg4[%c0_21, %c0_22] : memref<1x2xf32, #tpu.memory_space<vmem>>, vector<1x2xf32>
      %38 = vector.broadcast %37 : vector<1x2xf32> to vector<256x2xf32>
      %39 = arith.addf %36, %38 : vector<256x2xf32>
      %c0_23 = arith.constant 0 : index
      %c0_24 = arith.constant 0 : index
      %40 = vector.load %arg5[%c0_23, %c0_24] : memref<16x2xbf16, #tpu.memory_space<vmem>>, vector<16x2xbf16>
      %cst_25 = arith.constant dense<0.000000e+00> : vector<256x2xf32>
      %41 = tpu.matmul %34, %40, %cst_25 {dimension_numbers = #tpu.dot_dimension_numbers<[1], [0], [0], [1], [0, 0, 1, 1], [], []>} : vector<256x16xbf16>, vector<16x2xbf16>, vector<256x2xf32> -> vector<256x2xf32>
      %c0_26 = arith.constant 0 : index
      %c0_27 = arith.constant 0 : index
      %42 = vector.load %arg6[%c0_26, %c0_27] : memref<1x2xf32, #tpu.memory_space<vmem>>, vector<1x2xf32>
      %43 = vector.broadcast %42 : vector<1x2xf32> to vector<256x2xf32>
      %44 = arith.addf %41, %43 : vector<256x2xf32>
      %c0_28 = arith.constant 0 : index
      %c0_29 = arith.constant 0 : index
      %45 = vector.load %arg7[%c0_28, %c0_29] : memref<16x16xbf16, #tpu.memory_space<vmem>>, vector<16x16xbf16>
      %cst_30 = arith.constant dense<0.000000e+00> : vector<256x16xf32>
      %46 = tpu.matmul %34, %45, %cst_30 {dimension_numbers = #tpu.dot_dimension_numbers<[1], [0], [0], [1], [0, 0, 1, 1], [], []>} : vector<256x16xbf16>, vector<16x16xbf16>, vector<256x16xf32> -> vector<256x16xf32>
      %c0_31 = arith.constant 0 : index
      %c0_32 = arith.constant 0 : index
      %47 = vector.load %arg8[%c0_31, %c0_32] : memref<1x16xf32, #tpu.memory_space<vmem>>, vector<1x16xf32>
      %48 = vector.broadcast %47 : vector<1x16xf32> to vector<256x16xf32>
      %49 = arith.addf %46, %48 : vector<256x16xf32>
      %50 = arith.truncf %39 : vector<256x2xf32> to vector<256x2xbf16>
      %c0_33 = arith.constant 0 : index
      %c0_34 = arith.constant 0 : index
      %51 = vector.load %arg11[%c0_33, %c0_34] : memref<256x2xbf16, #tpu.memory_space<vmem>>, vector<256x2xbf16>
      tpu.vector_store %arg11[%c0_33, %c0_34], %50 {strides = array<i32>} : memref<256x2xbf16, #tpu.memory_space<vmem>>, vector<256x2xbf16>,
      %52 = arith.truncf %44 : vector<256x2xf32> to vector<256x2xbf16>
      %c0_35 = arith.constant 0 : index
      %c0_36 = arith.constant 0 : index
      %53 = vector.load %arg12[%c0_35, %c0_36] : memref<256x2xbf16, #tpu.memory_space<vmem>>, vector<256x2xbf16>
      tpu.vector_store %arg12[%c0_35, %c0_36], %52 {strides = array<i32>} : memref<256x2xbf16, #tpu.memory_space<vmem>>, vector<256x2xbf16>,
      %54 = arith.truncf %49 : vector<256x16xf32> to vector<256x16xbf16>
      %c0_37 = arith.constant 0 : index
      %c0_38 = arith.constant 0 : index
      %55 = vector.load %arg13[%c0_37, %c0_38] : memref<256x16xbf16, #tpu.memory_space<vmem>>, vector<256x16xbf16>
      tpu.vector_store %arg13[%c0_37, %c0_38], %54 {strides = array<i32>} : memref<256x16xbf16, #tpu.memory_space<vmem>>, vector<256x16xbf16>,
    } else {
    }
    %c128_i32 = arith.constant 128 : i32
    %3 = arith.muli %arg1, %c128_i32 : i32
    %4 = tpu.assume_multiple %3, 128 : i32
    %5 = arith.index_cast %4 : i32 to index
    %c0 = arith.constant 0 : index
    %6 = vector.load %arg11[%5, %c0] : memref<256x2xbf16, #tpu.memory_space<vmem>>, vector<128x2xbf16>
    %c0_1 = arith.constant 0 : index
    %c0_2 = arith.constant 0 : index
    %7 = vector.load %arg12[%c0_1, %c0_2] : memref<256x2xbf16, #tpu.memory_space<vmem>>, vector<256x2xbf16>
    %cst = arith.constant dense<0.000000e+00> : vector<128x256xf32>
    %8 = tpu.matmul %6, %7, %cst {dimension_numbers = #tpu.dot_dimension_numbers<[1], [1], [0], [0], [0, 0, 1, 0], [], []>} : vector<128x2xbf16>, vector<256x2xbf16>, vector<128x256xf32> -> vector<128x256xf32>
    %cst_3 = arith.constant dense<0xFF800000> : vector<128xf32>
    %9 = vector.multi_reduction <maximumf>, %8, %cst_3 [1] : vector<128x256xf32> to vector<128xf32>
    %10 = vector.shape_cast %9 : vector<128xf32> to vector<128x1xf32>
    %11 = vector.broadcast %10 : vector<128x1xf32> to vector<128x256xf32>
    %12 = arith.subf %8, %11 : vector<128x256xf32>
    %13 = math.exp %12 : vector<128x256xf32>
    %cst_4 = arith.constant dense<0.000000e+00> : vector<128xf32>
    %14 = vector.multi_reduction <add>, %13, %cst_4 [1] : vector<128x256xf32> to vector<128xf32>
    %15 = vector.shape_cast %14 : vector<128xf32> to vector<128x1xf32>
    %16 = arith.truncf %13 : vector<128x256xf32> to vector<128x256xbf16>
    %c0_5 = arith.constant 0 : index
    %c0_6 = arith.constant 0 : index
    %17 = vector.load %arg13[%c0_5, %c0_6] : memref<256x16xbf16, #tpu.memory_space<vmem>>, vector<256x16xbf16>
    %cst_7 = arith.constant dense<0.000000e+00> : vector<128x16xf32>
    %18 = tpu.matmul %16, %17, %cst_7 {dimension_numbers = #tpu.dot_dimension_numbers<[1], [0], [0], [1], [0, 0, 1, 1], [], []>} : vector<128x256xbf16>, vector<256x16xbf16>, vector<128x16xf32> -> vector<128x16xf32>
    %c0_8 = arith.constant 0 : index
    %c0_9 = arith.constant 0 : index
    %19 = memref.load %arg9[%c0_8, %c0_9] : memref<1x1xf32, #tpu.memory_space<smem>>
    %20 = tpu.reciprocal %15 {approx = true} : vector<128x1xf32> -> vector<128x1xf32>
    %21 = vector.broadcast %19 : f32 to vector<128x1xf32>
    %22 = arith.mulf %21, %20 : vector<128x1xf32>
    %c0_10 = arith.constant 0 : index
    %23 = arith.index_cast %4 : i32 to index
    %c0_11 = arith.constant 0 : index
    %24 = vector.load %arg2[%c0_10, %23, %c0_11] : memref<1x256x16xbf16, #tpu.memory_space<vmem>>, vector<1x128x16xbf16>
    %25 = vector.shape_cast %24 : vector<1x128x16xbf16> to vector<128x16xbf16>
    %26 = arith.extf %25 : vector<128x16xbf16> to vector<128x16xf32>
    %27 = vector.broadcast %22 : vector<128x1xf32> to vector<128x16xf32>
    %28 = arith.mulf %27, %18 : vector<128x16xf32>
    %29 = arith.addf %28, %26 : vector<128x16xf32>
    %c0_12 = arith.constant 0 : index
    %c0_13 = arith.constant 0 : index
    %c0_14 = arith.constant 0 : index
    %30 = vector.load %arg10[%c0_12, %c0_13, %c0_14] : memref<1x128x16xf32, #tpu.memory_space<vmem>>, vector<1x128x16xf32>
    %31 = vector.shape_cast %30 : vector<1x128x16xf32> to vector<128x16xf32>
    %32 = vector.shape_cast %29 : vector<128x16xf32> to vector<1x128x16xf32>
    tpu.vector_store %arg10[%c0_12, %c0_13, %c0_14], %32 {strides = array<i32>} : memref<1x128x16xf32, #tpu.memory_space<vmem>>, vector<1x128x16xf32>,
    return
  }
  func.func @transform_0(%arg0: i32, %arg1: i32) -> (i32, i32, i32) {
    %c0_i32 = arith.constant 0 : i32
    %c0_i32_0 = arith.constant 0 : i32
    %c0_i32_1 = arith.constant 0 : i32
    return %arg0, %c0_i32, %c0_i32_0 : i32, i32, i32
  }
  func.func @transform_1(%arg0: i32, %arg1: i32) -> (i32, i32) {
    %c0_i32 = arith.constant 0 : i32
    %c0_i32_0 = arith.constant 0 : i32
    %c0_i32_1 = arith.constant 0 : i32
    return %c0_i32, %c0_i32_0 : i32, i32
  }
  func.func @transform_2(%arg0: i32, %arg1: i32) -> (i32, i32) {
    %c0_i32 = arith.constant 0 : i32
    %c0_i32_0 = arith.constant 0 : i32
    %c0_i32_1 = arith.constant 0 : i32
    return %c0_i32, %c0_i32_0 : i32, i32
  }
  func.func @transform_3(%arg0: i32, %arg1: i32) -> (i32, i32) {
    %c0_i32 = arith.constant 0 : i32
    %c0_i32_0 = arith.constant 0 : i32
    %c0_i32_1 = arith.constant 0 : i32
    return %c0_i32, %c0_i32_0 : i32, i32
  }
  func.func @transform_4(%arg0: i32, %arg1: i32) -> (i32, i32) {
    %c0_i32 = arith.constant 0 : i32
    %c0_i32_0 = arith.constant 0 : i32
    %c0_i32_1 = arith.constant 0 : i32
    return %c0_i32, %c0_i32_0 : i32, i32
  }
  func.func @transform_5(%arg0: i32, %arg1: i32) -> (i32, i32) {
    %c0_i32 = arith.constant 0 : i32
    %c0_i32_0 = arith.constant 0 : i32
    %c0_i32_1 = arith.constant 0 : i32
    return %c0_i32, %c0_i32_0 : i32, i32
  }
  func.func @transform_6(%arg0: i32, %arg1: i32) -> (i32, i32) {
    %c0_i32 = arith.constant 0 : i32
    %c0_i32_0 = arith.constant 0 : i32
    %c0_i32_1 = arith.constant 0 : i32
    return %c0_i32, %c0_i32_0 : i32, i32
  }
  func.func @transform_7(%arg0: i32, %arg1: i32) -> (i32, i32) {
    %c0_i32 = arith.constant 0 : i32
    %c0_i32_0 = arith.constant 0 : i32
    %c0_i32_1 = arith.constant 0 : i32
    return %c0_i32, %c0_i32_0 : i32, i32
  }
  func.func @transform_8(%arg0: i32, %arg1: i32) -> (i32, i32, i32) {
    %c0_i32 = arith.constant 0 : i32
    %c0_i32_0 = arith.constant 0 : i32
    return %arg0, %arg1, %c0_i32 : i32, i32, i32
  }
}

</mosaic_0001>

<llo_original>
// kernel: tpu_custom_call.1
$region0: #{tpu_custom_call.1}
  #allocation0 [shape = 'u32[]', space=smem, size = 0x4, offset = 0x4, fixed_abs, tag = 'smem constant byte address 0x4 - core index']
  #allocation1 [shape = 'u32[144,128]{1,0:T(1,128)}', space=vmem, size = 0x12000, scoped, tag = 'internal scratch']
  #allocation2 [shape = 'bf16[256,2]{1,0:T(16,128)(2,1)}', space=vmem, size = 0x10000, scoped, tag = 'scratch operand']
  #allocation3 [shape = 'bf16[256,2]{1,0:T(16,128)(2,1)}', space=vmem, size = 0x10000, scoped, tag = 'scratch operand']
  #allocation4 [shape = 'bf16[256,16]{1,0:T(16,128)(2,1)}', space=vmem, size = 0x10000, scoped, tag = 'scratch operand']
  #allocation5 [shape = 'f32[1,1]{1,0:T(1,128)S(6)}', space=smem, size = 0x200, scoped, tag = 'scoped memory for tpu_custom_call.1']
  %s0 = inlined_call_operand.vmem [shape: bf16[2,256,16], index: 0, kind: input, shape index: {}]
  %s1 = inlined_call_operand.vmem [shape: bf16[16,2], index: 1, kind: input, shape index: {}]
  %s2 = inlined_call_operand.vmem [shape: f32[1,2], index: 2, kind: input, shape index: {}]
  %s3 = inlined_call_operand.vmem [shape: bf16[16,2], index: 3, kind: input, shape index: {}]
  %s4 = inlined_call_operand.vmem [shape: f32[1,2], index: 4, kind: input, shape index: {}]
  %s5 = inlined_call_operand.vmem [shape: bf16[16,16], index: 5, kind: input, shape index: {}]
  %s6 = inlined_call_operand.vmem [shape: f32[1,16], index: 6, kind: input, shape index: {}]
  %s7 = inlined_call_operand.<no memory space> [shape: f32[1,1], index: 7, kind: input, shape index: {}]
  %s8 = inlined_call_operand.vmem [shape: f32[2,256,16], index: 8, kind: output, shape index: {}]
  %s9 = sld [smem:[#allocation0]]
  $region69: #{tpu_custom_call.1} parent=0
    _
  %s11 = ssub.s32 1, %s9
  %s12 = scalar_select 0, %s11, %s9
  %13 = sst [smem:[#allocation5]] %s7
  loop: start=0, step=1, limit=6
  $region2: #{tpu_custom_call.1} parent=0 // loop_pre_header
    _
  $region3: #{tpu_custom_call.1} parent=0 // loop_header
    %s15 = sphi 0, %s19
    %p16 = scmp.ge.s32.totalorder %s15, 6
    %s22 = sphi 0, %s34
    %s23 = sphi 0, %s30
    %s24 = sphi 0, %s22
    %s25 = sphi 0, %s23
    %s26 = sphi 0, %s24
    %s27 = sphi 0, %s25
    %s37 = sphi 0, %s39
    %s40 = sphi 0, %s37
    %s41 = sphi 0, %s40
    %s57 = sphi 0, %s41
    %s61 = sphi 0, %s61
    %s63 = sphi 0, %s61
    %s64 = sphi 0, %s63
    %s78 = sphi 0, %s64
    %s82 = sphi 0, %s82
    %s84 = sphi 0, %s82
    %s85 = sphi 0, %s84
    %s99 = sphi 0, %s85
    %s103 = sphi 0, %s103
    %s105 = sphi 0, %s103
    %s106 = sphi 0, %s105
    %s120 = sphi 0, %s106
    %s124 = sphi 0, %s124
    %s126 = sphi 0, %s124
    %s127 = sphi 0, %s126
    %s141 = sphi 0, %s127
    %s145 = sphi 0, %s145
    %s147 = sphi 0, %s145
    %s148 = sphi 0, %s147
    %s162 = sphi 0, %s148
    %s166 = sphi 0, %s166
    %s168 = sphi 0, %s166
    %s169 = sphi 0, %s168
    %s183 = sphi 0, %s169
    %s187 = sphi 0, %s187
    %s189 = sphi 0, %s187
    %s190 = sphi 0, %s189
    %s204 = sphi 0, %s190
    %s212 = sphi 0, %s214
    %s215 = sphi 0, %s212
    %s216 = sphi 0, %s215
    %s232 = sphi 0, %s216
  $region4: #{tpu_custom_call.1} parent=0 // loop_header_branch
    %18 = sbr.rel (%p16) target = $region8
  $region5: #{tpu_custom_call.1} parent=0 // loop_body
    %s20 = ssub.s32 %s15, 1
    %s21 = ssub.s32 %s15, 2
    %s28 = sadd.s32 1, %s23
    %p29 = scmp.ge.s32.totalorder %s28, 2
    %s30 = scalar_select %p29, 0, %s28
    %s31 = sadd.s32 1, %s22
    %s32 = scalar_select %p29, %s31, %s22
    %p33 = scmp.ge.s32.totalorder %s32, 2
    %s34 = scalar_select %p33, 0, %s32
    %s35 = ssub.s32 %s22, %s34
    %p36 = scmp.eq.s32.totalorder %s35, 0
    %s38 = sadd.s32 %s37, 1
    %s39 = scalar_select %p36, %s37, %s38
    %p42 = pneg %p36
    %p43 = scmp.eq.s32.totalorder %s15, 3
    %p44 = por %p42, %p43
    %p45 = scmp.ne.s32.totalorder %s37, %s40
    %p46 = scmp.eq.s32.totalorder %s15, 0
    %p47 = por %p45, %p46
    %p48 = scmp.ne.s32.totalorder %s37, %s40
    %p49 = scmp.eq.s32.totalorder %s20, 3
    %p50 = por %p48, %p49
    %p51 = scmp.ne.s32.totalorder %s40, %s41
    %p52 = scmp.eq.s32.totalorder %s20, 0
    %p53 = por %p51, %p52
    %p54 = scmp.ne.s32.totalorder %s40, %s41
    %p55 = scmp.eq.s32.totalorder %s21, 3
    %p56 = por %p54, %p55
    %p58 = scmp.ne.s32.totalorder %s41, %s57
    %p59 = scmp.eq.s32.totalorder %s21, 0
    %p60 = por %p58, %p59
    %s62 = sadd.s32 %s61, 1
    %p65 = scmp.eq.s32.totalorder %s15, 3
    %p66 = scmp.ne.s32.totalorder %s61, %s63
    %p67 = scmp.eq.s32.totalorder %s15, 0
    %p68 = por %p66, %p67
    %p69 = scmp.ne.s32.totalorder %s61, %s63
    %p70 = scmp.eq.s32.totalorder %s20, 3
    %p71 = por %p69, %p70
    %p72 = scmp.ne.s32.totalorder %s63, %s64
    %p73 = scmp.eq.s32.totalorder %s20, 0
    %p74 = por %p72, %p73
    %p75 = scmp.ne.s32.totalorder %s63, %s64
    %p76 = scmp.eq.s32.totalorder %s21, 3
    %p77 = por %p75, %p76
    %p79 = scmp.ne.s32.totalorder %s64, %s78
    %p80 = scmp.eq.s32.totalorder %s21, 0
    %p81 = por %p79, %p80
    %s83 = sadd.s32 %s82, 1
    %p86 = scmp.eq.s32.totalorder %s15, 3
    %p87 = scmp.ne.s32.totalorder %s82, %s84
    %p88 = scmp.eq.s32.totalorder %s15, 0
    %p89 = por %p87, %p88
    %p90 = scmp.ne.s32.totalorder %s82, %s84
    %p91 = scmp.eq.s32.totalorder %s20, 3
    %p92 = por %p90, %p91
    %p93 = scmp.ne.s32.totalorder %s84, %s85
    %p94 = scmp.eq.s32.totalorder %s20, 0
    %p95 = por %p93, %p94
    %p96 = scmp.ne.s32.totalorder %s84, %s85
    %p97 = scmp.eq.s32.totalorder %s21, 3
    %p98 = por %p96, %p97
    %p100 = scmp.ne.s32.totalorder %s85, %s99
    %p101 = scmp.eq.s32.totalorder %s21, 0
    %p102 = por %p100, %p101
    %s104 = sadd.s32 %s103, 1
    %p107 = scmp.eq.s32.totalorder %s15, 3
    %p108 = scmp.ne.s32.totalorder %s103, %s105
    %p109 = scmp.eq.s32.totalorder %s15, 0
    %p110 = por %p108, %p109
    %p111 = scmp.ne.s32.totalorder %s103, %s105
    %p112 = scmp.eq.s32.totalorder %s20, 3
    %p113 = por %p111, %p112
    %p114 = scmp.ne.s32.totalorder %s105, %s106
    %p115 = scmp.eq.s32.totalorder %s20, 0
    %p116 = por %p114, %p115
    %p117 = scmp.ne.s32.totalorder %s105, %s106
    %p118 = scmp.eq.s32.totalorder %s21, 3
    %p119 = por %p117, %p118
    %p121 = scmp.ne.s32.totalorder %s106, %s120
    %p122 = scmp.eq.s32.totalorder %s21, 0
    %p123 = por %p121, %p122
    %s125 = sadd.s32 %s124, 1
    %p128 = scmp.eq.s32.totalorder %s15, 3
    %p129 = scmp.ne.s32.totalorder %s124, %s126
    %p130 = scmp.eq.s32.totalorder %s15, 0
    %p131 = por %p129, %p130
    %p132 = scmp.ne.s32.totalorder %s124, %s126
    %p133 = scmp.eq.s32.totalorder %s20, 3
    %p134 = por %p132, %p133
    %p135 = scmp.ne.s32.totalorder %s126, %s127
    %p136 = scmp.eq.s32.totalorder %s20, 0
    %p137 = por %p135, %p136
    %p138 = scmp.ne.s32.totalorder %s126, %s127
    %p139 = scmp.eq.s32.totalorder %s21, 3
    %p140 = por %p138, %p139
    %p142 = scmp.ne.s32.totalorder %s127, %s141
    %p143 = scmp.eq.s32.totalorder %s21, 0
    %p144 = por %p142, %p143
    %s146 = sadd.s32 %s145, 1
    %p149 = scmp.eq.s32.totalorder %s15, 3
    %p150 = scmp.ne.s32.totalorder %s145, %s147
    %p151 = scmp.eq.s32.totalorder %s15, 0
    %p152 = por %p150, %p151
    %p153 = scmp.ne.s32.totalorder %s145, %s147
    %p154 = scmp.eq.s32.totalorder %s20, 3
    %p155 = por %p153, %p154
    %p156 = scmp.ne.s32.totalorder %s147, %s148
    %p157 = scmp.eq.s32.totalorder %s20, 0
    %p158 = por %p156, %p157
    %p159 = scmp.ne.s32.totalorder %s147, %s148
    %p160 = scmp.eq.s32.totalorder %s21, 3
    %p161 = por %p159, %p160
    %p163 = scmp.ne.s32.totalorder %s148, %s162
    %p164 = scmp.eq.s32.totalorder %s21, 0
    %p165 = por %p163, %p164
    %s167 = sadd.s32 %s166, 1
    %p170 = scmp.eq.s32.totalorder %s15, 3
    %p171 = scmp.ne.s32.totalorder %s166, %s168
    %p172 = scmp.eq.s32.totalorder %s15, 0
    %p173 = por %p171, %p172
    %p174 = scmp.ne.s32.totalorder %s166, %s168
    %p175 = scmp.eq.s32.totalorder %s20, 3
    %p176 = por %p174, %p175
    %p177 = scmp.ne.s32.totalorder %s168, %s169
    %p178 = scmp.eq.s32.totalorder %s20, 0
    %p179 = por %p177, %p178
    %p180 = scmp.ne.s32.totalorder %s168, %s169
    %p181 = scmp.eq.s32.totalorder %s21, 3
    %p182 = por %p180, %p181
    %p184 = scmp.ne.s32.totalorder %s169, %s183
    %p185 = scmp.eq.s32.totalorder %s21, 0
    %p186 = por %p184, %p185
    %s188 = sadd.s32 %s187, 1
    %p191 = scmp.eq.s32.totalorder %s15, 3
    %p192 = scmp.ne.s32.totalorder %s187, %s189
    %p193 = scmp.eq.s32.totalorder %s15, 0
    %p194 = por %p192, %p193
    %p195 = scmp.ne.s32.totalorder %s187, %s189
    %p196 = scmp.eq.s32.totalorder %s20, 3
    %p197 = por %p195, %p196
    %p198 = scmp.ne.s32.totalorder %s189, %s190
    %p199 = scmp.eq.s32.totalorder %s20, 0
    %p200 = por %p198, %p199
    %p201 = scmp.ne.s32.totalorder %s189, %s190
    %p202 = scmp.eq.s32.totalorder %s21, 3
    %p203 = por %p201, %p202
    %p205 = scmp.ne.s32.totalorder %s190, %s204
    %p206 = scmp.eq.s32.totalorder %s21, 0
    %p207 = por %p205, %p206
    %s208 = ssub.s32 %s22, %s34
    %s209 = ssub.s32 %s23, %s30
    %s210 = sor.u32 %s208, %s209
    %p211 = scmp.eq.s32.totalorder %s210, 0
    %s213 = sadd.s32 %s212, 1
    %s214 = scalar_select %p211, %s212, %s213
    %p217 = pneg %p211
    %p218 = scmp.eq.s32.totalorder %s15, 3
    %p219 = por %p217, %p218
    %p220 = scmp.ne.s32.totalorder %s212, %s215
    %p221 = scmp.eq.s32.totalorder %s15, 0
    %p222 = por %p220, %p221
    %p223 = scmp.ne.s32.totalorder %s212, %s215
    %p224 = scmp.eq.s32.totalorder %s20, 3
    %p225 = por %p223, %p224
    %p226 = scmp.ne.s32.totalorder %s215, %s216
    %p227 = scmp.eq.s32.totalorder %s20, 0
    %p228 = por %p226, %p227
    %p229 = scmp.ne.s32.totalorder %s215, %s216
    %p230 = scmp.eq.s32.totalorder %s21, 3
    %p231 = por %p229, %p230
    %p233 = scmp.ne.s32.totalorder %s216, %s232
    %p234 = scmp.eq.s32.totalorder %s21, 0
    %p235 = por %p233, %p234
    %p236 = scmp.le.s32.totalorder 1, %s15
    %p237 = scmp.lt.s32.totalorder %s15, 5
    %p238 = pnand %p236, %p237
    %p239 = pneg %p238
    // Predicated region
    $region9: #{tpu_custom_call.1} parent=5 // pred_check
      _
    $region10: #{tpu_custom_call.1} parent=5 // pred_check_branch
      %241 = sbr.rel (%p238) target = $region12
    $region11: #{tpu_custom_call.1} parent=5 // pred_region
      %s242 = ssub.s32 %s15, 1
      // Predicated region
      $region13: #{tpu_custom_call.1} parent=11 // pred_check
        %p243 = pneg %p74
      $region14: #{tpu_custom_call.1} parent=11 // pred_check_branch
        %245 = sbr.rel (%p243) target = $region16
      $region15: #{tpu_custom_call.1} parent=11 // pred_region
        _
      $region16: #{tpu_custom_call.1} parent=11 // pred_fallthru
        _
      // Predicated region
      $region17: #{tpu_custom_call.1} parent=11 // pred_check
        %p246 = pneg %p95
      $region18: #{tpu_custom_call.1} parent=11 // pred_check_branch
        %248 = sbr.rel (%p246) target = $region20
      $region19: #{tpu_custom_call.1} parent=11 // pred_region
        _
      $region20: #{tpu_custom_call.1} parent=11 // pred_fallthru
        _
      // Predicated region
      $region21: #{tpu_custom_call.1} parent=11 // pred_check
        %p249 = pneg %p116
      $region22: #{tpu_custom_call.1} parent=11 // pred_check_branch
        %251 = sbr.rel (%p249) target = $region24
      $region23: #{tpu_custom_call.1} parent=11 // pred_region
        _
      $region24: #{tpu_custom_call.1} parent=11 // pred_fallthru
        _
      // Predicated region
      $region25: #{tpu_custom_call.1} parent=11 // pred_check
        %p252 = pneg %p137
      $region26: #{tpu_custom_call.1} parent=11 // pred_check_branch
        %254 = sbr.rel (%p252) target = $region28
      $region27: #{tpu_custom_call.1} parent=11 // pred_region
        _
      $region28: #{tpu_custom_call.1} parent=11 // pred_fallthru
        _
      // Predicated region
      $region29: #{tpu_custom_call.1} parent=11 // pred_check
        %p255 = pneg %p158
      $region30: #{tpu_custom_call.1} parent=11 // pred_check_branch
        %257 = sbr.rel (%p255) target = $region32
      $region31: #{tpu_custom_call.1} parent=11 // pred_region
        _
      $region32: #{tpu_custom_call.1} parent=11 // pred_fallthru
        _
      // Predicated region
      $region33: #{tpu_custom_call.1} parent=11 // pred_check
        %p258 = pneg %p179
      $region34: #{tpu_custom_call.1} parent=11 // pred_check_branch
        %260 = sbr.rel (%p258) target = $region36
      $region35: #{tpu_custom_call.1} parent=11 // pred_region
        _
      $region36: #{tpu_custom_call.1} parent=11 // pred_fallthru
        _
      // Predicated region
      $region37: #{tpu_custom_call.1} parent=11 // pred_check
        %p261 = pneg %p200
      $region38: #{tpu_custom_call.1} parent=11 // pred_check_branch
        %263 = sbr.rel (%p261) target = $region40
      $region39: #{tpu_custom_call.1} parent=11 // pred_region
        _
      $region40: #{tpu_custom_call.1} parent=11 // pred_fallthru
        _
    $region12: #{tpu_custom_call.1} parent=5 // pred_fallthru
      _
    %p264 = scmp.lt.s32.totalorder %s15, 4
    // Predicated region
    $region41: #{tpu_custom_call.1} parent=5 // pred_check
      %p265 = pneg %p264
    $region42: #{tpu_custom_call.1} parent=5 // pred_check_branch
      %267 = sbr.rel (%p265) target = $region44
    $region43: #{tpu_custom_call.1} parent=5 // pred_region
      // Predicated region
      $region45: #{tpu_custom_call.1} parent=43 // pred_check
        %p268 = pneg %p47
      $region46: #{tpu_custom_call.1} parent=43 // pred_check_branch
        %270 = sbr.rel (%p268) target = $region48
      $region47: #{tpu_custom_call.1} parent=43 // pred_region
        %p271 = scmp.lt.s32.totalorder %s22, 1
        %s272 = scalar_select %p271, %s22, 1
        %s273 = smul.addr %s272, 32
        %s274 = smul.addr %s273, 4
        %s275 = scalar_lea.vmem %s0, %s274
      $region48: #{tpu_custom_call.1} parent=43 // pred_fallthru
        _
    $region44: #{tpu_custom_call.1} parent=5 // pred_fallthru
      _
    %p276 = scmp.le.s32.totalorder 1, %s15
    %p277 = scmp.lt.s32.totalorder %s15, 5
    %p278 = pnand %p276, %p277
    %p279 = pneg %p278
    // Predicated region
    $region49: #{tpu_custom_call.1} parent=5 // pred_check
      _
    $region50: #{tpu_custom_call.1} parent=5 // pred_check_branch
      %281 = sbr.rel (%p278) target = $region52
    $region51: #{tpu_custom_call.1} parent=5 // pred_region
      %s282 = ssub.s32 %s15, 1
      %p283 = scmp.lt.s32.totalorder %s24, 1
      %s284 = scalar_select %p283, %s24, 1
      %s285 = smul.addr %s284, 32
      %s286 = smul.addr %s285, 4
      %s287 = scalar_lea.vmem %s0, %s286
      %p288 = pneg %p53
      %p289 = pneg %p50
      %p290 = pneg %p74
      %p291 = pneg %p71
      %p292 = pneg %p95
      %p293 = pneg %p92
      %p294 = pneg %p116
      %p295 = pneg %p113
      %p296 = pneg %p137
      %p297 = pneg %p134
      %p298 = pneg %p158
      %p299 = pneg %p155
      %p300 = pneg %p179
      %p301 = pneg %p176
      %p302 = pneg %p200
      %p303 = pneg %p197
      %p304 = pneg %p228
      %p305 = pneg %p225
      %s306 = smul.u32 16, %s25
      %p307 = scmp.lt.s32.totalorder %s24, 1
      %s308 = scalar_select %p307, %s24, 1
      %p309 = scmp.lt.s32.totalorder %s306, 31
      %s310 = scalar_select %p309, %s306, 31
      %s311 = smul.addr %s308, 32
      %s312 = sadd.s32 %s310, %s311
      %s313 = smul.addr %s312, 8
      %s314 = scalar_lea.vmem %s8, %s313
      %p315 = scmp.lt.s32.totalorder %s24, 1
      %s316 = scalar_select %p315, %s24, 1
      %s317 = smul.addr %s316, 32
      %s318 = smul.addr %s317, 4
      %s319 = scalar_lea.vmem %s0, %s318
      %s320 = smul.u32 16, %s25
      %p321 = scmp.lt.s32.totalorder %s24, 1
      %s322 = scalar_select %p321, %s24, 1
      %p323 = scmp.lt.s32.totalorder %s320, 31
      %s324 = scalar_select %p323, %s320, 31
      %s325 = smul.addr %s322, 32
      %s326 = sadd.s32 %s324, %s325
      %s327 = smul.addr %s326, 8
      %s328 = scalar_lea.vmem %s8, %s327
      %s329 = smul.u32 16, %s25
      %p331 = scmp.eq.s32.totalorder %s25, 0
      // Predicated region
      $region53: #{tpu_custom_call.1} parent=51 // pred_check
        %p332 = pneg %p331
      $region54: #{tpu_custom_call.1} parent=51 // pred_check_branch
        %334 = sbr.rel (%p332) target = $region56
      $region55: #{tpu_custom_call.1} parent=51 // pred_region
        %v335 = vld [vmem:[%s319] sm:$0xf]
        %v336 = vld [vmem:[%s319 + $0x4] sm:$0xf]
        %v337 = vld [vmem:[%s319 + $0x8] sm:$0xf]
        %v338 = vld [vmem:[%s319 + $0xc] sm:$0xf]
        %v339 = vld [vmem:[%s319 + $0x10] sm:$0xf]
        %v340 = vld [vmem:[%s319 + $0x14] sm:$0xf]
        %v341 = vld [vmem:[%s319 + $0x18] sm:$0xf]
        %v342 = vld [vmem:[%s319 + $0x1c] sm:$0xf]
        %v343 = vld [vmem:[%s319 + $0x20] sm:$0xf]
        %v344 = vld [vmem:[%s319 + $0x24] sm:$0xf]
        %v345 = vld [vmem:[%s319 + $0x28] sm:$0xf]
        %v346 = vld [vmem:[%s319 + $0x2c] sm:$0xf]
        %v347 = vld [vmem:[%s319 + $0x30] sm:$0xf]
        %v348 = vld [vmem:[%s319 + $0x34] sm:$0xf]
        %v349 = vld [vmem:[%s319 + $0x38] sm:$0xf]
        %v350 = vld [vmem:[%s319 + $0x3c] sm:$0xf]
        %v351 = vld [vmem:[%s319 + $0x40] sm:$0xf]
        %v352 = vld [vmem:[%s319 + $0x44] sm:$0xf]
        %v353 = vld [vmem:[%s319 + $0x48] sm:$0xf]
        %v354 = vld [vmem:[%s319 + $0x4c] sm:$0xf]
        %v355 = vld [vmem:[%s319 + $0x50] sm:$0xf]
        %v356 = vld [vmem:[%s319 + $0x54] sm:$0xf]
        %v357 = vld [vmem:[%s319 + $0x58] sm:$0xf]
        %v358 = vld [vmem:[%s319 + $0x5c] sm:$0xf]
        %v359 = vld [vmem:[%s319 + $0x60] sm:$0xf]
        %v360 = vld [vmem:[%s319 + $0x64] sm:$0xf]
        %v361 = vld [vmem:[%s319 + $0x68] sm:$0xf]
        %v362 = vld [vmem:[%s319 + $0x6c] sm:$0xf]
        %v363 = vld [vmem:[%s319 + $0x70] sm:$0xf]
        %v364 = vld [vmem:[%s319 + $0x74] sm:$0xf]
        %v365 = vld [vmem:[%s319 + $0x78] sm:$0xf]
        %v366 = vld [vmem:[%s319 + $0x7c] sm:$0xf]
        %v367 = vld [vmem:[%s1] sm:$0xf]
        %v368 = vld [vmem:[%s1 + $0x4] sm:$0xf]
        %v369 = vld [vmem:[%s2] sm:$0x1]
        %v371 = vlaneseq
        %v372 = vshrl.u32 %v371, 7
        %v373 = vsub.s32 0, %v372
        %v374 = vrot.slane %v369, %v373
        %v408 = vunpack.c.l.b16 %v335
        %v409 = vunpack.c.l.b16 %v336
        %v410 = vunpack.c.l.b16 %v337
        %v411 = vunpack.c.l.b16 %v338
        %v412 = vunpack.c.l.b16 %v339
        %v413 = vunpack.c.l.b16 %v340
        %v414 = vunpack.c.l.b16 %v341
        %v415 = vunpack.c.l.b16 %v342
        %v416 = vunpack.c.l.b16 %v343
        %v417 = vunpack.c.l.b16 %v344
        %v418 = vunpack.c.l.b16 %v345
        %v419 = vunpack.c.l.b16 %v346
        %v420 = vunpack.c.l.b16 %v347
        %v421 = vunpack.c.l.b16 %v348
        %v422 = vunpack.c.l.b16 %v349
        %v423 = vunpack.c.l.b16 %v350
        %v424 = vunpack.c.l.b16 %v351
        %v425 = vunpack.c.l.b16 %v352
        %v426 = vunpack.c.l.b16 %v353
        %v427 = vunpack.c.l.b16 %v354
        %v428 = vunpack.c.l.b16 %v355
        %v429 = vunpack.c.l.b16 %v356
        %v430 = vunpack.c.l.b16 %v357
        %v431 = vunpack.c.l.b16 %v358
        %v432 = vunpack.c.l.b16 %v359
        %v433 = vunpack.c.l.b16 %v360
        %v434 = vunpack.c.l.b16 %v361
        %v435 = vunpack.c.l.b16 %v362
        %v436 = vunpack.c.l.b16 %v363
        %v437 = vunpack.c.l.b16 %v364
        %v438 = vunpack.c.l.b16 %v365
        %v439 = vunpack.c.l.b16 %v366
        %v440 = vpack.c.b16 %v409, %v408
        %v441 = vpack.c.b16 %v411, %v410
        %v442 = vpack.c.b16 %v413, %v412
        %v443 = vpack.c.b16 %v415, %v414
        %v444 = vpack.c.b16 %v417, %v416
        %v445 = vpack.c.b16 %v419, %v418
        %v446 = vpack.c.b16 %v421, %v420
        %v447 = vpack.c.b16 %v423, %v422
        %v448 = vpack.c.b16 %v425, %v424
        %v449 = vpack.c.b16 %v427, %v426
        %v450 = vpack.c.b16 %v429, %v428
        %v451 = vpack.c.b16 %v431, %v430
        %v452 = vpack.c.b16 %v433, %v432
        %v453 = vpack.c.b16 %v435, %v434
        %v454 = vpack.c.b16 %v437, %v436
        %v455 = vpack.c.b16 %v439, %v438
        %v458 = vunpack.c.l.b16 %v367
        %v459 = vunpack.c.l.b16 %v368
        %v460 = vpack.c.b16 %v459, %v458
        %vm462 = vcmask 130048
        %v464 = vsel %vm462, %v440, 0
        %v467 = vsel %vm462, %v441, 0
        %v470 = vsel %vm462, %v442, 0
        %v473 = vsel %vm462, %v443, 0
        %v476 = vsel %vm462, %v444, 0
        %v479 = vsel %vm462, %v445, 0
        %v482 = vsel %vm462, %v446, 0
        %v485 = vsel %vm462, %v447, 0
        %v488 = vsel %vm462, %v448, 0
        %v491 = vsel %vm462, %v449, 0
        %v494 = vsel %vm462, %v450, 0
        %v497 = vsel %vm462, %v451, 0
        %v500 = vsel %vm462, %v452, 0
        %v503 = vsel %vm462, %v453, 0
        %v506 = vsel %vm462, %v454, 0
        %v509 = vsel %vm462, %v455, 0
        %511 = vmatprep.subr.bf16.mxu0 0
        %512 = vmatpush1.bf16.msra.mxu0 %v460
        %513 = vmatprep.subr.bf16.mxu0 0
        %514 = vmatpush1.bf16.msra.mxu0 0
        %515 = vmatprep.subr.bf16.mxu0 0
        %516 = vmatpush1.bf16.msra.mxu0 0
        %517 = vmatprep.subr.bf16.mxu0 0
        %518 = vmatpush1.bf16.msra.mxu0 0
        %519 = vmatprep.subr.bf16.mxu0 0
        %520 = vmatpush1.bf16.msra.mxu0 0
        %521 = vmatprep.subr.bf16.mxu0 0
        %522 = vmatpush1.bf16.msra.mxu0 0
        %523 = vmatprep.subr.bf16.mxu0 0
        %524 = vmatpush1.bf16.msra.mxu0 0
        %525 = vmatprep.subr.bf16.mxu0 0
        %526 = vmatpush1.bf16.msra.mxu0 0
        %527 = vmatprep.subr.bf16.mxu0 0
        %528 = vmatpush1.bf16.msra.mxu0 0
        %529 = vmatprep.subr.bf16.mxu0 0
        %530 = vmatpush1.bf16.msra.mxu0 0
        %531 = vmatprep.subr.bf16.mxu0 0
        %532 = vmatpush1.bf16.msra.mxu0 0
        %533 = vmatprep.subr.bf16.mxu0 0
        %534 = vmatpush1.bf16.msra.mxu0 0
        %535 = vmatprep.subr.bf16.mxu0 0
        %536 = vmatpush1.bf16.msra.mxu0 0
        %537 = vmatprep.subr.bf16.mxu0 0
        %538 = vmatpush1.bf16.msra.mxu0 0
        %539 = vmatprep.subr.bf16.mxu0 0
        %540 = vmatpush1.bf16.msra.mxu0 0
        %541 = vmatprep.subr.bf16.mxu0 0
        %542 = vmatpush1.bf16.msra.mxu0 0
        %543 = vmatprep.mubr.bf16.mxu0 0
        %544 = vmatmul.mubr.bf16.gmra.mrb[0].mxu0 %v464
        %v545 = vpop.f32.mrb[0].mxu0
        %v546 = vadd.f32 %v374, %v545
        %v547 = vpop.f32.mrb[0].mxu0
        %v548 = vpop.f32.mrb[0].mxu0
        %v549 = vadd.f32 %v374, %v548
        %v550 = vpop.f32.mrb[0].mxu0
        %551 = vmatprep.mubr.bf16.mxu0 0
        %552 = vmatmul.mubr.bf16.gmra.mrb[0].mxu0 %v467
        %v553 = vpop.f32.mrb[0].mxu0
        %v554 = vadd.f32 %v374, %v553
        %v555 = vpop.f32.mrb[0].mxu0
        %v556 = vpop.f32.mrb[0].mxu0
        %v557 = vadd.f32 %v374, %v556
        %v558 = vpop.f32.mrb[0].mxu0
        %559 = vmatprep.mubr.bf16.mxu0 0
        %560 = vmatmul.mubr.bf16.gmra.mrb[0].mxu0 %v470
        %v561 = vpop.f32.mrb[0].mxu0
        %v562 = vadd.f32 %v374, %v561
        %v563 = vpop.f32.mrb[0].mxu0
        %v564 = vpop.f32.mrb[0].mxu0
        %v565 = vadd.f32 %v374, %v564
        %v566 = vpop.f32.mrb[0].mxu0
        %567 = vmatprep.mubr.bf16.mxu0 0
        %568 = vmatmul.mubr.bf16.gmra.mrb[0].mxu0 %v473
        %v569 = vpop.f32.mrb[0].mxu0
        %v570 = vadd.f32 %v374, %v569
        %v571 = vpop.f32.mrb[0].mxu0
        %v572 = vpop.f32.mrb[0].mxu0
        %v573 = vadd.f32 %v374, %v572
        %v574 = vpop.f32.mrb[0].mxu0
        %575 = vmatprep.mubr.bf16.mxu0 0
        %576 = vmatmul.mubr.bf16.gmra.mrb[0].mxu0 %v476
        %v577 = vpop.f32.mrb[0].mxu0
        %v578 = vadd.f32 %v374, %v577
        %v579 = vpop.f32.mrb[0].mxu0
        %v580 = vpop.f32.mrb[0].mxu0
        %v581 = vadd.f32 %v374, %v580
        %v582 = vpop.f32.mrb[0].mxu0
        %583 = vmatprep.mubr.bf16.mxu0 0
        %584 = vmatmul.mubr.bf16.gmra.mrb[0].mxu0 %v479
        %v585 = vpop.f32.mrb[0].mxu0
        %v586 = vadd.f32 %v374, %v585
        %v587 = vpop.f32.mrb[0].mxu0
        %v588 = vpop.f32.mrb[0].mxu0
        %v589 = vadd.f32 %v374, %v588
        %v590 = vpop.f32.mrb[0].mxu0
        %591 = vmatprep.mubr.bf16.mxu0 0
        %592 = vmatmul.mubr.bf16.gmra.mrb[0].mxu0 %v482
        %v593 = vpop.f32.mrb[0].mxu0
        %v594 = vadd.f32 %v374, %v593
        %v595 = vpop.f32.mrb[0].mxu0
        %v596 = vpop.f32.mrb[0].mxu0
        %v597 = vadd.f32 %v374, %v596
        %v598 = vpop.f32.mrb[0].mxu0
        %599 = vmatprep.mubr.bf16.mxu0 0
        %600 = vmatmul.mubr.bf16.gmra.mrb[0].mxu0 %v485
        %v601 = vpop.f32.mrb[0].mxu0
        %v602 = vadd.f32 %v374, %v601
        %v603 = vpop.f32.mrb[0].mxu0
        %v604 = vpop.f32.mrb[0].mxu0
        %v605 = vadd.f32 %v374, %v604
        %v606 = vpop.f32.mrb[0].mxu0
        %607 = vmatprep.mubr.bf16.mxu0 0
        %608 = vmatmul.mubr.bf16.gmra.mrb[0].mxu0 %v488
        %v609 = vpop.f32.mrb[0].mxu0
        %v610 = vadd.f32 %v374, %v609
        %v611 = vpop.f32.mrb[0].mxu0
        %v612 = vpop.f32.mrb[0].mxu0
        %v613 = vadd.f32 %v374, %v612
        %v614 = vpop.f32.mrb[0].mxu0
        %615 = vmatprep.mubr.bf16.mxu0 0
        %616 = vmatmul.mubr.bf16.gmra.mrb[0].mxu0 %v491
        %v617 = vpop.f32.mrb[0].mxu0
        %v618 = vadd.f32 %v374, %v617
        %v619 = vpop.f32.mrb[0].mxu0
        %v620 = vpop.f32.mrb[0].mxu0
        %v621 = vadd.f32 %v374, %v620
        %v622 = vpop.f32.mrb[0].mxu0
        %623 = vmatprep.mubr.bf16.mxu0 0
        %624 = vmatmul.mubr.bf16.gmra.mrb[0].mxu0 %v494
        %v625 = vpop.f32.mrb[0].mxu0
        %v626 = vadd.f32 %v374, %v625
        %v627 = vpop.f32.mrb[0].mxu0
        %v628 = vpop.f32.mrb[0].mxu0
        %v629 = vadd.f32 %v374, %v628
        %v630 = vpop.f32.mrb[0].mxu0
        %631 = vmatprep.mubr.bf16.mxu0 0
        %632 = vmatmul.mubr.bf16.gmra.mrb[0].mxu0 %v497
        %v633 = vpop.f32.mrb[0].mxu0
        %v634 = vadd.f32 %v374, %v633
        %v635 = vpop.f32.mrb[0].mxu0
        %v636 = vpop.f32.mrb[0].mxu0
        %v637 = vadd.f32 %v374, %v636
        %v638 = vpop.f32.mrb[0].mxu0
        %639 = vmatprep.mubr.bf16.mxu0 0
        %640 = vmatmul.mubr.bf16.gmra.mrb[0].mxu0 %v500
        %v641 = vpop.f32.mrb[0].mxu0
        %v642 = vadd.f32 %v374, %v641
        %v643 = vpop.f32.mrb[0].mxu0
        %v644 = vpop.f32.mrb[0].mxu0
        %v645 = vadd.f32 %v374, %v644
        %v646 = vpop.f32.mrb[0].mxu0
        %647 = vmatprep.mubr.bf16.mxu0 0
        %648 = vmatmul.mubr.bf16.gmra.mrb[0].mxu0 %v503
        %v649 = vpop.f32.mrb[0].mxu0
        %v650 = vadd.f32 %v374, %v649
        %v651 = vpop.f32.mrb[0].mxu0
        %v652 = vpop.f32.mrb[0].mxu0
        %v653 = vadd.f32 %v374, %v652
        %v654 = vpop.f32.mrb[0].mxu0
        %655 = vmatprep.mubr.bf16.mxu0 0
        %656 = vmatmul.mubr.bf16.gmra.mrb[0].mxu0 %v506
        %v657 = vpop.f32.mrb[0].mxu0
        %v658 = vadd.f32 %v374, %v657
        %v659 = vpop.f32.mrb[0].mxu0
        %v660 = vpop.f32.mrb[0].mxu0
        %v661 = vadd.f32 %v374, %v660
        %v662 = vpop.f32.mrb[0].mxu0
        %663 = vmatprep.mubr.bf16.mxu0 0
        %664 = vmatmul.mubr.bf16.gmra.mrb[0].mxu0 %v509
        %v665 = vpop.f32.mrb[0].mxu0
        %v666 = vadd.f32 %v374, %v665
        %v667 = vpop.f32.mrb[0].mxu0
        %v668 = vpop.f32.mrb[0].mxu0
        %v669 = vadd.f32 %v374, %v668
        %v670 = vpop.f32.mrb[0].mxu0
        %671 = vdwg.mxu0
        %v672 = vld [vmem:[%s3] sm:$0xf]
        %v673 = vld [vmem:[%s3 + $0x4] sm:$0xf]
        %v674 = vld [vmem:[%s4] sm:$0x1]
        %v676 = vlaneseq
        %v677 = vshrl.u32 %v676, 7
        %v678 = vsub.s32 0, %v677
        %v679 = vrot.slane %v674, %v678
        %v683 = vunpack.c.l.b16 %v672
        %v684 = vunpack.c.l.b16 %v673
        %v685 = vpack.c.b16 %v684, %v683
        %687 = vmatprep.subr.bf16.mxu0 0
        %688 = vmatpush1.bf16.msra.mxu0 %v685
        %689 = vmatprep.subr.bf16.mxu0 0
        %690 = vmatpush1.bf16.msra.mxu0 0
        %691 = vmatprep.subr.bf16.mxu0 0
        %692 = vmatpush1.bf16.msra.mxu0 0
        %693 = vmatprep.subr.bf16.mxu0 0
        %694 = vmatpush1.bf16.msra.mxu0 0
        %695 = vmatprep.subr.bf16.mxu0 0
        %696 = vmatpush1.bf16.msra.mxu0 0
        %697 = vmatprep.subr.bf16.mxu0 0
        %698 = vmatpush1.bf16.msra.mxu0 0
        %699 = vmatprep.subr.bf16.mxu0 0
        %700 = vmatpush1.bf16.msra.mxu0 0
        %701 = vmatprep.subr.bf16.mxu0 0
        %702 = vmatpush1.bf16.msra.mxu0 0
        %703 = vmatprep.subr.bf16.mxu0 0
        %704 = vmatpush1.bf16.msra.mxu0 0
        %705 = vmatprep.subr.bf16.mxu0 0
        %706 = vmatpush1.bf16.msra.mxu0 0
        %707 = vmatprep.subr.bf16.mxu0 0
        %708 = vmatpush1.bf16.msra.mxu0 0
        %709 = vmatprep.subr.bf16.mxu0 0
        %710 = vmatpush1.bf16.msra.mxu0 0
        %711 = vmatprep.subr.bf16.mxu0 0
        %712 = vmatpush1.bf16.msra.mxu0 0
        %713 = vmatprep.subr.bf16.mxu0 0
        %714 = vmatpush1.bf16.msra.mxu0 0
        %715 = vmatprep.subr.bf16.mxu0 0
        %716 = vmatpush1.bf16.msra.mxu0 0
        %717 = vmatprep.subr.bf16.mxu0 0
        %718 = vmatpush1.bf16.msra.mxu0 0
        %719 = vmatprep.mubr.bf16.mxu0 0
        %720 = vmatmul.mubr.bf16.gmra.mrb[0].mxu0 %v464
        %v721 = vpop.f32.mrb[0].mxu0
        %v722 = vadd.f32 %v679, %v721
        %v723 = vpop.f32.mrb[0].mxu0
        %v724 = vpop.f32.mrb[0].mxu0
        %v725 = vadd.f32 %v679, %v724
        %v726 = vpop.f32.mrb[0].mxu0
        %727 = vmatprep.mubr.bf16.mxu0 0
        %728 = vmatmul.mubr.bf16.gmra.mrb[0].mxu0 %v467
        %v729 = vpop.f32.mrb[0].mxu0
        %v730 = vadd.f32 %v679, %v729
        %v731 = vpop.f32.mrb[0].mxu0
        %v732 = vpop.f32.mrb[0].mxu0
        %v733 = vadd.f32 %v679, %v732
        %v734 = vpop.f32.mrb[0].mxu0
        %735 = vmatprep.mubr.bf16.mxu0 0
        %736 = vmatmul.mubr.bf16.gmra.mrb[0].mxu0 %v470
        %v737 = vpop.f32.mrb[0].mxu0
        %v738 = vadd.f32 %v679, %v737
        %v739 = vpop.f32.mrb[0].mxu0
        %v740 = vpop.f32.mrb[0].mxu0
        %v741 = vadd.f32 %v679, %v740
        %v742 = vpop.f32.mrb[0].mxu0
        %743 = vmatprep.mubr.bf16.mxu0 0
        %744 = vmatmul.mubr.bf16.gmra.mrb[0].mxu0 %v473
        %v745 = vpop.f32.mrb[0].mxu0
        %v746 = vadd.f32 %v679, %v745
        %v747 = vpop.f32.mrb[0].mxu0
        %v748 = vpop.f32.mrb[0].mxu0
        %v749 = vadd.f32 %v679, %v748
        %v750 = vpop.f32.mrb[0].mxu0
        %751 = vmatprep.mubr.bf16.mxu0 0
        %752 = vmatmul.mubr.bf16.gmra.mrb[0].mxu0 %v476
        %v753 = vpop.f32.mrb[0].mxu0
        %v754 = vadd.f32 %v679, %v753
        %v755 = vpop.f32.mrb[0].mxu0
        %v756 = vpop.f32.mrb[0].mxu0
        %v757 = vadd.f32 %v679, %v756
        %v758 = vpop.f32.mrb[0].mxu0
        %759 = vmatprep.mubr.bf16.mxu0 0
        %760 = vmatmul.mubr.bf16.gmra.mrb[0].mxu0 %v479
        %v761 = vpop.f32.mrb[0].mxu0
        %v762 = vadd.f32 %v679, %v761
        %v763 = vpop.f32.mrb[0].mxu0
        %v764 = vpop.f32.mrb[0].mxu0
        %v765 = vadd.f32 %v679, %v764
        %v766 = vpop.f32.mrb[0].mxu0
        %767 = vmatprep.mubr.bf16.mxu0 0
        %768 = vmatmul.mubr.bf16.gmra.mrb[0].mxu0 %v482
        %v769 = vpop.f32.mrb[0].mxu0
        %v770 = vadd.f32 %v679, %v769
        %v771 = vpop.f32.mrb[0].mxu0
        %v772 = vpop.f32.mrb[0].mxu0
        %v773 = vadd.f32 %v679, %v772
        %v774 = vpop.f32.mrb[0].mxu0
        %775 = vmatprep.mubr.bf16.mxu0 0
        %776 = vmatmul.mubr.bf16.gmra.mrb[0].mxu0 %v485
        %v777 = vpop.f32.mrb[0].mxu0
        %v778 = vadd.f32 %v679, %v777
        %v779 = vpop.f32.mrb[0].mxu0
        %v780 = vpop.f32.mrb[0].mxu0
        %v781 = vadd.f32 %v679, %v780
        %v782 = vpop.f32.mrb[0].mxu0
        %783 = vmatprep.mubr.bf16.mxu0 0
        %784 = vmatmul.mubr.bf16.gmra.mrb[0].mxu0 %v488
        %v785 = vpop.f32.mrb[0].mxu0
        %v786 = vadd.f32 %v679, %v785
        %v787 = vpop.f32.mrb[0].mxu0
        %v788 = vpop.f32.mrb[0].mxu0
        %v789 = vadd.f32 %v679, %v788
        %v790 = vpop.f32.mrb[0].mxu0
        %791 = vmatprep.mubr.bf16.mxu0 0
        %792 = vmatmul.mubr.bf16.gmra.mrb[0].mxu0 %v491
        %v793 = vpop.f32.mrb[0].mxu0
        %v794 = vadd.f32 %v679, %v793
        %v795 = vpop.f32.mrb[0].mxu0
        %v796 = vpop.f32.mrb[0].mxu0
        %v797 = vadd.f32 %v679, %v796
        %v798 = vpop.f32.mrb[0].mxu0
        %799 = vmatprep.mubr.bf16.mxu0 0
        %800 = vmatmul.mubr.bf16.gmra.mrb[0].mxu0 %v494
        %v801 = vpop.f32.mrb[0].mxu0
        %v802 = vadd.f32 %v679, %v801
        %v803 = vpop.f32.mrb[0].mxu0
        %v804 = vpop.f32.mrb[0].mxu0
        %v805 = vadd.f32 %v679, %v804
        %v806 = vpop.f32.mrb[0].mxu0
        %807 = vmatprep.mubr.bf16.mxu0 0
        %808 = vmatmul.mubr.bf16.gmra.mrb[0].mxu0 %v497
        %v809 = vpop.f32.mrb[0].mxu0
        %v810 = vadd.f32 %v679, %v809
        %v811 = vpop.f32.mrb[0].mxu0
        %v812 = vpop.f32.mrb[0].mxu0
        %v813 = vadd.f32 %v679, %v812
        %v814 = vpop.f32.mrb[0].mxu0
        %815 = vmatprep.mubr.bf16.mxu0 0
        %816 = vmatmul.mubr.bf16.gmra.mrb[0].mxu0 %v500
        %v817 = vpop.f32.mrb[0].mxu0
        %v818 = vadd.f32 %v679, %v817
        %v819 = vpop.f32.mrb[0].mxu0
        %v820 = vpop.f32.mrb[0].mxu0
        %v821 = vadd.f32 %v679, %v820
        %v822 = vpop.f32.mrb[0].mxu0
        %823 = vmatprep.mubr.bf16.mxu0 0
        %824 = vmatmul.mubr.bf16.gmra.mrb[0].mxu0 %v503
        %v825 = vpop.f32.mrb[0].mxu0
        %v826 = vadd.f32 %v679, %v825
        %v827 = vpop.f32.mrb[0].mxu0
        %v828 = vpop.f32.mrb[0].mxu0
        %v829 = vadd.f32 %v679, %v828
        %v830 = vpop.f32.mrb[0].mxu0
        %831 = vmatprep.mubr.bf16.mxu0 0
        %832 = vmatmul.mubr.bf16.gmra.mrb[0].mxu0 %v506
        %v833 = vpop.f32.mrb[0].mxu0
        %v834 = vadd.f32 %v679, %v833
        %v835 = vpop.f32.mrb[0].mxu0
        %v836 = vpop.f32.mrb[0].mxu0
        %v837 = vadd.f32 %v679, %v836
        %v838 = vpop.f32.mrb[0].mxu0
        %839 = vmatprep.mubr.bf16.mxu0 0
        %840 = vmatmul.mubr.bf16.gmra.mrb[0].mxu0 %v509
        %v841 = vpop.f32.mrb[0].mxu0
        %v842 = vadd.f32 %v679, %v841
        %v843 = vpop.f32.mrb[0].mxu0
        %v844 = vpop.f32.mrb[0].mxu0
        %v845 = vadd.f32 %v679, %v844
        %v846 = vpop.f32.mrb[0].mxu0
        %847 = vdwg.mxu0
        %v848 = vld [vmem:[%s5] sm:$0xf]
        %v849 = vld [vmem:[%s5 + $0x4] sm:$0xf]
        %v850 = vld [vmem:[%s6] sm:$0x1]
        %v852 = vlaneseq
        %v853 = vshrl.u32 %v852, 7
        %v854 = vsub.s32 0, %v853
        %v855 = vrot.slane %v850, %v854
        %v859 = vunpack.c.l.b16 %v848
        %v860 = vunpack.c.l.b16 %v849
        %v861 = vpack.c.b16 %v860, %v859
        %863 = vmatprep.subr.bf16.mxu0 0
        %864 = vmatpush1.bf16.msra.mxu0 %v861
        %865 = vmatprep.subr.bf16.mxu0 0
        %866 = vmatpush1.bf16.msra.mxu0 0
        %867 = vmatprep.subr.bf16.mxu0 0
        %868 = vmatpush1.bf16.msra.mxu0 0
        %869 = vmatprep.subr.bf16.mxu0 0
        %870 = vmatpush1.bf16.msra.mxu0 0
        %871 = vmatprep.subr.bf16.mxu0 0
        %872 = vmatpush1.bf16.msra.mxu0 0
        %873 = vmatprep.subr.bf16.mxu0 0
        %874 = vmatpush1.bf16.msra.mxu0 0
        %875 = vmatprep.subr.bf16.mxu0 0
        %876 = vmatpush1.bf16.msra.mxu0 0
        %877 = vmatprep.subr.bf16.mxu0 0
        %878 = vmatpush1.bf16.msra.mxu0 0
        %879 = vmatprep.subr.bf16.mxu0 0
        %880 = vmatpush1.bf16.msra.mxu0 0
        %881 = vmatprep.subr.bf16.mxu0 0
        %882 = vmatpush1.bf16.msra.mxu0 0
        %883 = vmatprep.subr.bf16.mxu0 0
        %884 = vmatpush1.bf16.msra.mxu0 0
        %885 = vmatprep.subr.bf16.mxu0 0
        %886 = vmatpush1.bf16.msra.mxu0 0
        %887 = vmatprep.subr.bf16.mxu0 0
        %888 = vmatpush1.bf16.msra.mxu0 0
        %889 = vmatprep.subr.bf16.mxu0 0
        %890 = vmatpush1.bf16.msra.mxu0 0
        %891 = vmatprep.subr.bf16.mxu0 0
        %892 = vmatpush1.bf16.msra.mxu0 0
        %893 = vmatprep.subr.bf16.mxu0 0
        %894 = vmatpush1.bf16.msra.mxu0 0
        %895 = vmatprep.mubr.bf16.mxu0 0
        %896 = vmatmul.mubr.bf16.gmra.mrb[0].mxu0 %v464
        %v897 = vpop.f32.mrb[0].mxu0
        %v898 = vadd.f32 %v855, %v897
        %v899 = vpop.f32.mrb[0].mxu0
        %v900 = vpop.f32.mrb[0].mxu0
        %v901 = vadd.f32 %v855, %v900
        %v902 = vpop.f32.mrb[0].mxu0
        %903 = vmatprep.mubr.bf16.mxu0 0
        %904 = vmatmul.mubr.bf16.gmra.mrb[0].mxu0 %v467
        %v905 = vpop.f32.mrb[0].mxu0
        %v906 = vadd.f32 %v855, %v905
        %v907 = vpop.f32.mrb[0].mxu0
        %v908 = vpop.f32.mrb[0].mxu0
        %v909 = vadd.f32 %v855, %v908
        %v910 = vpop.f32.mrb[0].mxu0
        %911 = vmatprep.mubr.bf16.mxu0 0
        %912 = vmatmul.mubr.bf16.gmra.mrb[0].mxu0 %v470
        %v913 = vpop.f32.mrb[0].mxu0
        %v914 = vadd.f32 %v855, %v913
        %v915 = vpop.f32.mrb[0].mxu0
        %v916 = vpop.f32.mrb[0].mxu0
        %v917 = vadd.f32 %v855, %v916
        %v918 = vpop.f32.mrb[0].mxu0
        %919 = vmatprep.mubr.bf16.mxu0 0
        %920 = vmatmul.mubr.bf16.gmra.mrb[0].mxu0 %v473
        %v921 = vpop.f32.mrb[0].mxu0
        %v922 = vadd.f32 %v855, %v921
        %v923 = vpop.f32.mrb[0].mxu0
        %v924 = vpop.f32.mrb[0].mxu0
        %v925 = vadd.f32 %v855, %v924
        %v926 = vpop.f32.mrb[0].mxu0
        %927 = vmatprep.mubr.bf16.mxu0 0
        %928 = vmatmul.mubr.bf16.gmra.mrb[0].mxu0 %v476
        %v929 = vpop.f32.mrb[0].mxu0
        %v930 = vadd.f32 %v855, %v929
        %v931 = vpop.f32.mrb[0].mxu0
        %v932 = vpop.f32.mrb[0].mxu0
        %v933 = vadd.f32 %v855, %v932
        %v934 = vpop.f32.mrb[0].mxu0
        %935 = vmatprep.mubr.bf16.mxu0 0
        %936 = vmatmul.mubr.bf16.gmra.mrb[0].mxu0 %v479
        %v937 = vpop.f32.mrb[0].mxu0
        %v938 = vadd.f32 %v855, %v937
        %v939 = vpop.f32.mrb[0].mxu0
        %v940 = vpop.f32.mrb[0].mxu0
        %v941 = vadd.f32 %v855, %v940
        %v942 = vpop.f32.mrb[0].mxu0
        %943 = vmatprep.mubr.bf16.mxu0 0
        %944 = vmatmul.mubr.bf16.gmra.mrb[0].mxu0 %v482
        %v945 = vpop.f32.mrb[0].mxu0
        %v946 = vadd.f32 %v855, %v945
        %v947 = vpop.f32.mrb[0].mxu0
        %v948 = vpop.f32.mrb[0].mxu0
        %v949 = vadd.f32 %v855, %v948
        %v950 = vpop.f32.mrb[0].mxu0
        %951 = vmatprep.mubr.bf16.mxu0 0
        %952 = vmatmul.mubr.bf16.gmra.mrb[0].mxu0 %v485
        %v953 = vpop.f32.mrb[0].mxu0
        %v954 = vadd.f32 %v855, %v953
        %v955 = vpop.f32.mrb[0].mxu0
        %v956 = vpop.f32.mrb[0].mxu0
        %v957 = vadd.f32 %v855, %v956
        %v958 = vpop.f32.mrb[0].mxu0
        %959 = vmatprep.mubr.bf16.mxu0 0
        %960 = vmatmul.mubr.bf16.gmra.mrb[0].mxu0 %v488
        %v961 = vpop.f32.mrb[0].mxu0
        %v962 = vadd.f32 %v855, %v961
        %v963 = vpop.f32.mrb[0].mxu0
        %v964 = vpop.f32.mrb[0].mxu0
        %v965 = vadd.f32 %v855, %v964
        %v966 = vpop.f32.mrb[0].mxu0
        %967 = vmatprep.mubr.bf16.mxu0 0
        %968 = vmatmul.mubr.bf16.gmra.mrb[0].mxu0 %v491
        %v969 = vpop.f32.mrb[0].mxu0
        %v970 = vadd.f32 %v855, %v969
        %v971 = vpop.f32.mrb[0].mxu0
        %v972 = vpop.f32.mrb[0].mxu0
        %v973 = vadd.f32 %v855, %v972
        %v974 = vpop.f32.mrb[0].mxu0
        %975 = vmatprep.mubr.bf16.mxu0 0
        %976 = vmatmul.mubr.bf16.gmra.mrb[0].mxu0 %v494
        %v977 = vpop.f32.mrb[0].mxu0
        %v978 = vadd.f32 %v855, %v977
        %v979 = vpop.f32.mrb[0].mxu0
        %v980 = vpop.f32.mrb[0].mxu0
        %v981 = vadd.f32 %v855, %v980
        %v982 = vpop.f32.mrb[0].mxu0
        %983 = vmatprep.mubr.bf16.mxu0 0
        %984 = vmatmul.mubr.bf16.gmra.mrb[0].mxu0 %v497
        %v985 = vpop.f32.mrb[0].mxu0
        %v986 = vadd.f32 %v855, %v985
        %v987 = vpop.f32.mrb[0].mxu0
        %v988 = vpop.f32.mrb[0].mxu0
        %v989 = vadd.f32 %v855, %v988
        %v990 = vpop.f32.mrb[0].mxu0
        %991 = vmatprep.mubr.bf16.mxu0 0
        %992 = vmatmul.mubr.bf16.gmra.mrb[0].mxu0 %v500
        %v993 = vpop.f32.mrb[0].mxu0
        %v994 = vadd.f32 %v855, %v993
        %v995 = vpop.f32.mrb[0].mxu0
        %v996 = vpop.f32.mrb[0].mxu0
        %v997 = vadd.f32 %v855, %v996
        %v998 = vpop.f32.mrb[0].mxu0
        %999 = vmatprep.mubr.bf16.mxu0 0
        %1000 = vmatmul.mubr.bf16.gmra.mrb[0].mxu0 %v503
        %v1001 = vpop.f32.mrb[0].mxu0
        %v1002 = vadd.f32 %v855, %v1001
        %v1003 = vpop.f32.mrb[0].mxu0
        %v1004 = vpop.f32.mrb[0].mxu0
        %v1005 = vadd.f32 %v855, %v1004
        %v1006 = vpop.f32.mrb[0].mxu0
        %1007 = vmatprep.mubr.bf16.mxu0 0
        %1008 = vmatmul.mubr.bf16.gmra.mrb[0].mxu0 %v506
        %v1009 = vpop.f32.mrb[0].mxu0
        %v1010 = vadd.f32 %v855, %v1009
        %v1011 = vpop.f32.mrb[0].mxu0
        %v1012 = vpop.f32.mrb[0].mxu0
        %v1013 = vadd.f32 %v855, %v1012
        %v1014 = vpop.f32.mrb[0].mxu0
        %1015 = vmatprep.mubr.bf16.mxu0 0
        %1016 = vmatmul.mubr.bf16.gmra.mrb[0].mxu0 %v509
        %v1017 = vpop.f32.mrb[0].mxu0
        %v1018 = vadd.f32 %v855, %v1017
        %v1019 = vpop.f32.mrb[0].mxu0
        %v1020 = vpop.f32.mrb[0].mxu0
        %v1021 = vadd.f32 %v855, %v1020
        %v1022 = vpop.f32.mrb[0].mxu0
        %1023 = vdwg.mxu0
        %v1024 = vpack.c.bf16 %v549, %v546
        %v1025 = vpack.c.bf16 %v557, %v554
        %v1026 = vpack.c.bf16 %v565, %v562
        %v1027 = vpack.c.bf16 %v573, %v570
        %v1028 = vpack.c.bf16 %v581, %v578
        %v1029 = vpack.c.bf16 %v589, %v586
        %v1030 = vpack.c.bf16 %v597, %v594
        %v1031 = vpack.c.bf16 %v605, %v602
        %v1032 = vpack.c.bf16 %v613, %v610
        %v1033 = vpack.c.bf16 %v621, %v618
        %v1034 = vpack.c.bf16 %v629, %v626
        %v1035 = vpack.c.bf16 %v637, %v634
        %v1036 = vpack.c.bf16 %v645, %v642
        %v1037 = vpack.c.bf16 %v653, %v650
        %v1038 = vpack.c.bf16 %v661, %v658
        %v1039 = vpack.c.bf16 %v669, %v666
        %vm1040 = vcmask 15360
        %1041 = vst.msk [vmem:[#allocation2] sm:$0xff] %vm1040, %v1024
        %1042 = vst.msk [vmem:[#allocation2 + $0x8] sm:$0xff] %vm1040, %v1025
        %1043 = vst.msk [vmem:[#allocation2 + $0x10] sm:$0xff] %vm1040, %v1026
        %1044 = vst.msk [vmem:[#allocation2 + $0x18] sm:$0xff] %vm1040, %v1027
        %1045 = vst.msk [vmem:[#allocation2 + $0x20] sm:$0xff] %vm1040, %v1028
        %1046 = vst.msk [vmem:[#allocation2 + $0x28] sm:$0xff] %vm1040, %v1029
        %1047 = vst.msk [vmem:[#allocation2 + $0x30] sm:$0xff] %vm1040, %v1030
        %1048 = vst.msk [vmem:[#allocation2 + $0x38] sm:$0xff] %vm1040, %v1031
        %1049 = vst.msk [vmem:[#allocation2 + $0x40] sm:$0xff] %vm1040, %v1032
        %1050 = vst.msk [vmem:[#allocation2 + $0x48] sm:$0xff] %vm1040, %v1033
        %1051 = vst.msk [vmem:[#allocation2 + $0x50] sm:$0xff] %vm1040, %v1034
        %1052 = vst.msk [vmem:[#allocation2 + $0x58] sm:$0xff] %vm1040, %v1035
        %1053 = vst.msk [vmem:[#allocation2 + $0x60] sm:$0xff] %vm1040, %v1036
        %1054 = vst.msk [vmem:[#allocation2 + $0x68] sm:$0xff] %vm1040, %v1037
        %1055 = vst.msk [vmem:[#allocation2 + $0x70] sm:$0xff] %vm1040, %v1038
        %1056 = vst.msk [vmem:[#allocation2 + $0x78] sm:$0xff] %vm1040, %v1039
        %v1057 = vpack.c.bf16 %v725, %v722
        %v1058 = vpack.c.bf16 %v733, %v730
        %v1059 = vpack.c.bf16 %v741, %v738
        %v1060 = vpack.c.bf16 %v749, %v746
        %v1061 = vpack.c.bf16 %v757, %v754
        %v1062 = vpack.c.bf16 %v765, %v762
        %v1063 = vpack.c.bf16 %v773, %v770
        %v1064 = vpack.c.bf16 %v781, %v778
        %v1065 = vpack.c.bf16 %v789, %v786
        %v1066 = vpack.c.bf16 %v797, %v794
        %v1067 = vpack.c.bf16 %v805, %v802
        %v1068 = vpack.c.bf16 %v813, %v810
        %v1069 = vpack.c.bf16 %v821, %v818
        %v1070 = vpack.c.bf16 %v829, %v826
        %v1071 = vpack.c.bf16 %v837, %v834
        %v1072 = vpack.c.bf16 %v845, %v842
        %1073 = vst.msk [vmem:[#allocation3] sm:$0xff] %vm1040, %v1057
        %1074 = vst.msk [vmem:[#allocation3 + $0x8] sm:$0xff] %vm1040, %v1058
        %1075 = vst.msk [vmem:[#allocation3 + $0x10] sm:$0xff] %vm1040, %v1059
        %1076 = vst.msk [vmem:[#allocation3 + $0x18] sm:$0xff] %vm1040, %v1060
        %1077 = vst.msk [vmem:[#allocation3 + $0x20] sm:$0xff] %vm1040, %v1061
        %1078 = vst.msk [vmem:[#allocation3 + $0x28] sm:$0xff] %vm1040, %v1062
        %1079 = vst.msk [vmem:[#allocation3 + $0x30] sm:$0xff] %vm1040, %v1063
        %1080 = vst.msk [vmem:[#allocation3 + $0x38] sm:$0xff] %vm1040, %v1064
        %1081 = vst.msk [vmem:[#allocation3 + $0x40] sm:$0xff] %vm1040, %v1065
        %1082 = vst.msk [vmem:[#allocation3 + $0x48] sm:$0xff] %vm1040, %v1066
        %1083 = vst.msk [vmem:[#allocation3 + $0x50] sm:$0xff] %vm1040, %v1067
        %1084 = vst.msk [vmem:[#allocation3 + $0x58] sm:$0xff] %vm1040, %v1068
        %1085 = vst.msk [vmem:[#allocation3 + $0x60] sm:$0xff] %vm1040, %v1069
        %1086 = vst.msk [vmem:[#allocation3 + $0x68] sm:$0xff] %vm1040, %v1070
        %1087 = vst.msk [vmem:[#allocation3 + $0x70] sm:$0xff] %vm1040, %v1071
        %1088 = vst.msk [vmem:[#allocation3 + $0x78] sm:$0xff] %vm1040, %v1072
        %v1089 = vpack.c.bf16 %v901, %v898
        %v1090 = vpack.c.bf16 %v909, %v906
        %v1091 = vpack.c.bf16 %v917, %v914
        %v1092 = vpack.c.bf16 %v925, %v922
        %v1093 = vpack.c.bf16 %v933, %v930
        %v1094 = vpack.c.bf16 %v941, %v938
        %v1095 = vpack.c.bf16 %v949, %v946
        %v1096 = vpack.c.bf16 %v957, %v954
        %v1097 = vpack.c.bf16 %v965, %v962
        %v1098 = vpack.c.bf16 %v973, %v970
        %v1099 = vpack.c.bf16 %v981, %v978
        %v1100 = vpack.c.bf16 %v989, %v986
        %v1101 = vpack.c.bf16 %v997, %v994
        %v1102 = vpack.c.bf16 %v1005, %v1002
        %v1103 = vpack.c.bf16 %v1013, %v1010
        %v1104 = vpack.c.bf16 %v1021, %v1018
        %1105 = vst.msk [vmem:[#allocation4] sm:$0xff] %vm462, %v1089
        %1106 = vst.msk [vmem:[#allocation4 + $0x8] sm:$0xff] %vm462, %v1090
        %1107 = vst.msk [vmem:[#allocation4 + $0x10] sm:$0xff] %vm462, %v1091
        %1108 = vst.msk [vmem:[#allocation4 + $0x18] sm:$0xff] %vm462, %v1092
        %1109 = vst.msk [vmem:[#allocation4 + $0x20] sm:$0xff] %vm462, %v1093
        %1110 = vst.msk [vmem:[#allocation4 + $0x28] sm:$0xff] %vm462, %v1094
        %1111 = vst.msk [vmem:[#allocation4 + $0x30] sm:$0xff] %vm462, %v1095
        %1112 = vst.msk [vmem:[#allocation4 + $0x38] sm:$0xff] %vm462, %v1096
        %1113 = vst.msk [vmem:[#allocation4 + $0x40] sm:$0xff] %vm462, %v1097
        %1114 = vst.msk [vmem:[#allocation4 + $0x48] sm:$0xff] %vm462, %v1098
        %1115 = vst.msk [vmem:[#allocation4 + $0x50] sm:$0xff] %vm462, %v1099
        %1116 = vst.msk [vmem:[#allocation4 + $0x58] sm:$0xff] %vm462, %v1100
        %1117 = vst.msk [vmem:[#allocation4 + $0x60] sm:$0xff] %vm462, %v1101
        %1118 = vst.msk [vmem:[#allocation4 + $0x68] sm:$0xff] %vm462, %v1102
        %1119 = vst.msk [vmem:[#allocation4 + $0x70] sm:$0xff] %vm462, %v1103
        %1120 = vst.msk [vmem:[#allocation4 + $0x78] sm:$0xff] %vm462, %v1104
      $region56: #{tpu_custom_call.1} parent=51 // pred_fallthru
        _
      %s1121 = smul.u32 %s25, 128
      %s1122 = sshra.s32 %s1121, 4
      %s1123 = sand.u32 %s1121, 15
      %s1124 = smul.addr %s1122, 8
      %s1125 = scalar_lea.vmem [#allocation2], %s1124
      %v1126 = vld [vmem:[%s1125] sm:$0xff]
      %v1127 = vld [vmem:[%s1125 + $0x8] sm:$0xff]
      %v1128 = vld [vmem:[%s1125 + $0x10] sm:$0xff]
      %v1129 = vld [vmem:[%s1125 + $0x18] sm:$0xff]
      %v1130 = vld [vmem:[%s1125 + $0x20] sm:$0xff]
      %v1131 = vld [vmem:[%s1125 + $0x28] sm:$0xff]
      %v1132 = vld [vmem:[%s1125 + $0x30] sm:$0xff]
      %v1133 = vld [vmem:[%s1125 + $0x38] sm:$0xff]
      %v1134 = vld [vmem:[#allocation3] sm:$0xff]
      %v1135 = vld [vmem:[#allocation3 + $0x8] sm:$0xff]
      %v1136 = vld [vmem:[#allocation3 + $0x10] sm:$0xff]
      %v1137 = vld [vmem:[#allocation3 + $0x18] sm:$0xff]
      %v1138 = vld [vmem:[#allocation3 + $0x20] sm:$0xff]
      %v1139 = vld [vmem:[#allocation3 + $0x28] sm:$0xff]
      %v1140 = vld [vmem:[#allocation3 + $0x30] sm:$0xff]
      %v1141 = vld [vmem:[#allocation3 + $0x38] sm:$0xff]
      %v1142 = vld [vmem:[#allocation3 + $0x40] sm:$0xff]
      %v1143 = vld [vmem:[#allocation3 + $0x48] sm:$0xff]
      %v1144 = vld [vmem:[#allocation3 + $0x50] sm:$0xff]
      %v1145 = vld [vmem:[#allocation3 + $0x58] sm:$0xff]
      %v1146 = vld [vmem:[#allocation3 + $0x60] sm:$0xff]
      %v1147 = vld [vmem:[#allocation3 + $0x68] sm:$0xff]
      %v1148 = vld [vmem:[#allocation3 + $0x70] sm:$0xff]
      %v1149 = vld [vmem:[#allocation3 + $0x78] sm:$0xff]
      %vm1150 = vcmask 15360
      %v1152 = vsel %vm1150, %v1126, 0
      %v1155 = vsel %vm1150, %v1127, 0
      %v1158 = vsel %vm1150, %v1128, 0
      %v1161 = vsel %vm1150, %v1129, 0
      %v1164 = vsel %vm1150, %v1130, 0
      %v1167 = vsel %vm1150, %v1131, 0
      %v1170 = vsel %vm1150, %v1132, 0
      %v1173 = vsel %vm1150, %v1133, 0
      %v1176 = vsel %vm1150, %v1134, 0
      %v1179 = vsel %vm1150, %v1135, 0
      %v1182 = vsel %vm1150, %v1136, 0
      %v1185 = vsel %vm1150, %v1137, 0
      %v1188 = vsel %vm1150, %v1138, 0
      %v1191 = vsel %vm1150, %v1139, 0
      %v1194 = vsel %vm1150, %v1140, 0
      %v1197 = vsel %vm1150, %v1141, 0
      %v1200 = vsel %vm1150, %v1142, 0
      %v1203 = vsel %vm1150, %v1143, 0
      %v1206 = vsel %vm1150, %v1144, 0
      %v1209 = vsel %vm1150, %v1145, 0
      %v1212 = vsel %vm1150, %v1146, 0
      %v1215 = vsel %vm1150, %v1147, 0
      %v1218 = vsel %vm1150, %v1148, 0
      %v1221 = vsel %vm1150, %v1149, 0
      %1223 = vmatprep.subr.bf16.mxu0 0
      %1224 = vmatpush1.bf16.xpose.msra.mxu0 %v1176
      %1225 = vmatprep.subr.bf16.mxu0 0
      %1226 = vmatpush1.bf16.xpose.msra.mxu0 %v1179
      %1227 = vmatprep.subr.bf16.mxu0 0
      %1228 = vmatpush1.bf16.xpose.msra.mxu0 %v1182
      %1229 = vmatprep.subr.bf16.mxu0 0
      %1230 = vmatpush1.bf16.xpose.msra.mxu0 %v1185
      %1231 = vmatprep.subr.bf16.mxu0 0
      %1232 = vmatpush1.bf16.xpose.msra.mxu0 %v1188
      %1233 = vmatprep.subr.bf16.mxu0 0
      %1234 = vmatpush1.bf16.xpose.msra.mxu0 %v1191
      %1235 = vmatprep.subr.bf16.mxu0 0
      %1236 = vmatpush1.bf16.xpose.msra.mxu0 %v1194
      %1237 = vmatprep.subr.bf16.mxu0 0
      %1238 = vmatpush1.bf16.xpose.msra.mxu0 %v1197
      %1239 = vmatprep.subr.bf16.mxu0 0
      %1240 = vmatpush1.bf16.xpose.msra.mxu0 %v1200
      %1241 = vmatprep.subr.bf16.mxu0 0
      %1242 = vmatpush1.bf16.xpose.msra.mxu0 %v1203
      %1243 = vmatprep.subr.bf16.mxu0 0
      %1244 = vmatpush1.bf16.xpose.msra.mxu0 %v1206
      %1245 = vmatprep.subr.bf16.mxu0 0
      %1246 = vmatpush1.bf16.xpose.msra.mxu0 %v1209
      %1247 = vmatprep.subr.bf16.mxu0 0
      %1248 = vmatpush1.bf16.xpose.msra.mxu0 %v1212
      %1249 = vmatprep.subr.bf16.mxu0 0
      %1250 = vmatpush1.bf16.xpose.msra.mxu0 %v1215
      %1251 = vmatprep.subr.bf16.mxu0 0
      %1252 = vmatpush1.bf16.xpose.msra.mxu0 %v1218
      %1253 = vmatprep.subr.bf16.mxu0 0
      %1254 = vmatpush1.bf16.xpose.msra.mxu0 %v1221
      %1255 = vmatprep.mubr.bf16.mxu0 0
      %1256 = vmatmul.mubr.bf16.gmra.mrb[0].mxu0 %v1152
      %v1257 = vpop.f32.mrb[0].mxu0
      %v1258 = vadd.f32 0.0, %v1257
      %v1259 = vpop.f32.mrb[0].mxu0
      %v1260 = vadd.f32 0.0, %v1259
      %v1261 = vpop.f32.mrb[0].mxu0
      %v1262 = vadd.f32 0.0, %v1261
      %v1263 = vpop.f32.mrb[0].mxu0
      %v1264 = vadd.f32 0.0, %v1263
      %1265 = vmatprep.mubr.bf16.mxu0 0
      %1266 = vmatmul.mubr.bf16.gmra.mrb[0].mxu0 %v1155
      %v1267 = vpop.f32.mrb[0].mxu0
      %v1268 = vadd.f32 0.0, %v1267
      %v1269 = vpop.f32.mrb[0].mxu0
      %v1270 = vadd.f32 0.0, %v1269
      %v1271 = vpop.f32.mrb[0].mxu0
      %v1272 = vadd.f32 0.0, %v1271
      %v1273 = vpop.f32.mrb[0].mxu0
      %v1274 = vadd.f32 0.0, %v1273
      %1275 = vmatprep.mubr.bf16.mxu0 0
      %1276 = vmatmul.mubr.bf16.gmra.mrb[0].mxu0 %v1158
      %v1277 = vpop.f32.mrb[0].mxu0
      %v1278 = vadd.f32 0.0, %v1277
      %v1279 = vpop.f32.mrb[0].mxu0
      %v1280 = vadd.f32 0.0, %v1279
      %v1281 = vpop.f32.mrb[0].mxu0
      %v1282 = vadd.f32 0.0, %v1281
      %v1283 = vpop.f32.mrb[0].mxu0
      %v1284 = vadd.f32 0.0, %v1283
      %1285 = vmatprep.mubr.bf16.mxu0 0
      %1286 = vmatmul.mubr.bf16.gmra.mrb[0].mxu0 %v1161
      %v1287 = vpop.f32.mrb[0].mxu0
      %v1288 = vadd.f32 0.0, %v1287
      %v1289 = vpop.f32.mrb[0].mxu0
      %v1290 = vadd.f32 0.0, %v1289
      %v1291 = vpop.f32.mrb[0].mxu0
      %v1292 = vadd.f32 0.0, %v1291
      %v1293 = vpop.f32.mrb[0].mxu0
      %v1294 = vadd.f32 0.0, %v1293
      %1295 = vmatprep.mubr.bf16.mxu0 0
      %1296 = vmatmul.mubr.bf16.gmra.mrb[0].mxu0 %v1164
      %v1297 = vpop.f32.mrb[0].mxu0
      %v1298 = vadd.f32 0.0, %v1297
      %v1299 = vpop.f32.mrb[0].mxu0
      %v1300 = vadd.f32 0.0, %v1299
      %v1301 = vpop.f32.mrb[0].mxu0
      %v1302 = vadd.f32 0.0, %v1301
      %v1303 = vpop.f32.mrb[0].mxu0
      %v1304 = vadd.f32 0.0, %v1303
      %1305 = vmatprep.mubr.bf16.mxu0 0
      %1306 = vmatmul.mubr.bf16.gmra.mrb[0].mxu0 %v1167
      %v1307 = vpop.f32.mrb[0].mxu0
      %v1308 = vadd.f32 0.0, %v1307
      %v1309 = vpop.f32.mrb[0].mxu0
      %v1310 = vadd.f32 0.0, %v1309
      %v1311 = vpop.f32.mrb[0].mxu0
      %v1312 = vadd.f32 0.0, %v1311
      %v1313 = vpop.f32.mrb[0].mxu0
      %v1314 = vadd.f32 0.0, %v1313
      %1315 = vmatprep.mubr.bf16.mxu0 0
      %1316 = vmatmul.mubr.bf16.gmra.mrb[0].mxu0 %v1170
      %v1317 = vpop.f32.mrb[0].mxu0
      %v1318 = vadd.f32 0.0, %v1317
      %v1319 = vpop.f32.mrb[0].mxu0
      %v1320 = vadd.f32 0.0, %v1319
      %v1321 = vpop.f32.mrb[0].mxu0
      %v1322 = vadd.f32 0.0, %v1321
      %v1323 = vpop.f32.mrb[0].mxu0
      %v1324 = vadd.f32 0.0, %v1323
      %1325 = vmatprep.mubr.bf16.mxu0 0
      %1326 = vmatmul.mubr.bf16.gmra.mrb[0].mxu0 %v1173
      %v1327 = vpop.f32.mrb[0].mxu0
      %v1328 = vadd.f32 0.0, %v1327
      %v1329 = vpop.f32.mrb[0].mxu0
      %v1330 = vadd.f32 0.0, %v1329
      %v1331 = vpop.f32.mrb[0].mxu0
      %v1332 = vadd.f32 0.0, %v1331
      %v1333 = vpop.f32.mrb[0].mxu0
      %v1334 = vadd.f32 0.0, %v1333
      %1335 = vdwg.mxu0
      %v1336 = vmax.f32 %v1258, %v1260
      %1337 = vmax.xlane.f32.xlu0 %v1336
      %v1338 = vpop.xlane.xlu0 %1337
      %v1339 = vmax.f32 %v1262, %v1264
      %1340 = vmax.xlane.f32.xlu0 %v1339
      %v1341 = vpop.xlane.xlu0 %1340
      %v1342 = vmax.f32 %v1268, %v1270
      %1343 = vmax.xlane.f32.xlu0 %v1342
      %v1344 = vpop.xlane.xlu0 %1343
      %v1345 = vmax.f32 %v1272, %v1274
      %1346 = vmax.xlane.f32.xlu0 %v1345
      %v1347 = vpop.xlane.xlu0 %1346
      %v1348 = vmax.f32 %v1278, %v1280
      %1349 = vmax.xlane.f32.xlu0 %v1348
      %v1350 = vpop.xlane.xlu0 %1349
      %v1351 = vmax.f32 %v1282, %v1284
      %1352 = vmax.xlane.f32.xlu0 %v1351
      %v1353 = vpop.xlane.xlu0 %1352
      %v1354 = vmax.f32 %v1288, %v1290
      %1355 = vmax.xlane.f32.xlu0 %v1354
      %v1356 = vpop.xlane.xlu0 %1355
      %v1357 = vmax.f32 %v1292, %v1294
      %1358 = vmax.xlane.f32.xlu0 %v1357
      %v1359 = vpop.xlane.xlu0 %1358
      %v1360 = vmax.f32 %v1298, %v1300
      %1361 = vmax.xlane.f32.xlu0 %v1360
      %v1362 = vpop.xlane.xlu0 %1361
      %v1363 = vmax.f32 %v1302, %v1304
      %1364 = vmax.xlane.f32.xlu0 %v1363
      %v1365 = vpop.xlane.xlu0 %1364
      %v1366 = vmax.f32 %v1308, %v1310
      %1367 = vmax.xlane.f32.xlu0 %v1366
      %v1368 = vpop.xlane.xlu0 %1367
      %v1369 = vmax.f32 %v1312, %v1314
      %1370 = vmax.xlane.f32.xlu0 %v1369
      %v1371 = vpop.xlane.xlu0 %1370
      %v1372 = vmax.f32 %v1318, %v1320
      %1373 = vmax.xlane.f32.xlu0 %v1372
      %v1374 = vpop.xlane.xlu0 %1373
      %v1375 = vmax.f32 %v1322, %v1324
      %1376 = vmax.xlane.f32.xlu0 %v1375
      %v1377 = vpop.xlane.xlu0 %1376
      %v1378 = vmax.f32 %v1328, %v1330
      %1379 = vmax.xlane.f32.xlu0 %v1378
      %v1380 = vpop.xlane.xlu0 %1379
      %v1381 = vmax.f32 %v1332, %v1334
      %1382 = vmax.xlane.f32.xlu0 %v1381
      %v1383 = vpop.xlane.xlu0 %1382
      %v1384 = vsub.f32 %v1258, %v1338
      %v1385 = vsub.f32 %v1260, %v1338
      %v1386 = vsub.f32 %v1262, %v1341
      %v1387 = vsub.f32 %v1264, %v1341
      %v1388 = vsub.f32 %v1268, %v1344
      %v1389 = vsub.f32 %v1270, %v1344
      %v1390 = vsub.f32 %v1272, %v1347
      %v1391 = vsub.f32 %v1274, %v1347
      %v1392 = vsub.f32 %v1278, %v1350
      %v1393 = vsub.f32 %v1280, %v1350
      %v1394 = vsub.f32 %v1282, %v1353
      %v1395 = vsub.f32 %v1284, %v1353
      %v1396 = vsub.f32 %v1288, %v1356
      %v1397 = vsub.f32 %v1290, %v1356
      %v1398 = vsub.f32 %v1292, %v1359
      %v1399 = vsub.f32 %v1294, %v1359
      %v1400 = vsub.f32 %v1298, %v1362
      %v1401 = vsub.f32 %v1300, %v1362
      %v1402 = vsub.f32 %v1302, %v1365
      %v1403 = vsub.f32 %v1304, %v1365
      %v1404 = vsub.f32 %v1308, %v1368
      %v1405 = vsub.f32 %v1310, %v1368
      %v1406 = vsub.f32 %v1312, %v1371
      %v1407 = vsub.f32 %v1314, %v1371
      %v1408 = vsub.f32 %v1318, %v1374
      %v1409 = vsub.f32 %v1320, %v1374
      %v1410 = vsub.f32 %v1322, %v1377
      %v1411 = vsub.f32 %v1324, %v1377
      %v1412 = vsub.f32 %v1328, %v1380
      %v1413 = vsub.f32 %v1330, %v1380
      %v1414 = vsub.f32 %v1332, %v1383
      %v1415 = vsub.f32 %v1334, %v1383
      %v1416 = vmul.f32 %v1384, 1.442695
      %v1417 = vpow.pop %v1416
      %v1418 = vmul.f32 %v1385, 1.442695
      %v1419 = vpow.pop %v1418
      %v1420 = vmul.f32 %v1386, 1.442695
      %v1421 = vpow.pop %v1420
      %v1422 = vmul.f32 %v1387, 1.442695
      %v1423 = vpow.pop %v1422
      %v1424 = vmul.f32 %v1388, 1.442695
      %v1425 = vpow.pop %v1424
      %v1426 = vmul.f32 %v1389, 1.442695
      %v1427 = vpow.pop %v1426
      %v1428 = vmul.f32 %v1390, 1.442695
      %v1429 = vpow.pop %v1428
      %v1430 = vmul.f32 %v1391, 1.442695
      %v1431 = vpow.pop %v1430
      %v1432 = vmul.f32 %v1392, 1.442695
      %v1433 = vpow.pop %v1432
      %v1434 = vmul.f32 %v1393, 1.442695
      %v1435 = vpow.pop %v1434
      %v1436 = vmul.f32 %v1394, 1.442695
      %v1437 = vpow.pop %v1436
      %v1438 = vmul.f32 %v1395, 1.442695
      %v1439 = vpow.pop %v1438
      %v1440 = vmul.f32 %v1396, 1.442695
      %v1441 = vpow.pop %v1440
      %v1442 = vmul.f32 %v1397, 1.442695
      %v1443 = vpow.pop %v1442
      %v1444 = vmul.f32 %v1398, 1.442695
      %v1445 = vpow.pop %v1444
      %v1446 = vmul.f32 %v1399, 1.442695
      %v1447 = vpow.pop %v1446
      %v1448 = vmul.f32 %v1400, 1.442695
      %v1449 = vpow.pop %v1448
      %v1450 = vmul.f32 %v1401, 1.442695
      %v1451 = vpow.pop %v1450
      %v1452 = vmul.f32 %v1402, 1.442695
      %v1453 = vpow.pop %v1452
      %v1454 = vmul.f32 %v1403, 1.442695
      %v1455 = vpow.pop %v1454
      %v1456 = vmul.f32 %v1404, 1.442695
      %v1457 = vpow.pop %v1456
      %v1458 = vmul.f32 %v1405, 1.442695
      %v1459 = vpow.pop %v1458
      %v1460 = vmul.f32 %v1406, 1.442695
      %v1461 = vpow.pop %v1460
      %v1462 = vmul.f32 %v1407, 1.442695
      %v1463 = vpow.pop %v1462
      %v1464 = vmul.f32 %v1408, 1.442695
      %v1465 = vpow.pop %v1464
      %v1466 = vmul.f32 %v1409, 1.442695
      %v1467 = vpow.pop %v1466
      %v1468 = vmul.f32 %v1410, 1.442695
      %v1469 = vpow.pop %v1468
      %v1470 = vmul.f32 %v1411, 1.442695
      %v1471 = vpow.pop %v1470
      %v1472 = vmul.f32 %v1412, 1.442695
      %v1473 = vpow.pop %v1472
      %v1474 = vmul.f32 %v1413, 1.442695
      %v1475 = vpow.pop %v1474
      %v1476 = vmul.f32 %v1414, 1.442695
      %v1477 = vpow.pop %v1476
      %v1478 = vmul.f32 %v1415, 1.442695
      %v1479 = vpow.pop %v1478
      %v1480 = vadd.f32 %v1417, %v1419
      %1481 = vadd.xlane.f32.xlu0 %v1480
      %v1482 = vpop.xlane.xlu0 %1481
      %v1483 = vadd.f32 %v1421, %v1423
      %1484 = vadd.xlane.f32.xlu0 %v1483
      %v1485 = vpop.xlane.xlu0 %1484
      %v1486 = vadd.f32 %v1425, %v1427
      %1487 = vadd.xlane.f32.xlu0 %v1486
      %v1488 = vpop.xlane.xlu0 %1487
      %v1489 = vadd.f32 %v1429, %v1431
      %1490 = vadd.xlane.f32.xlu0 %v1489
      %v1491 = vpop.xlane.xlu0 %1490
      %v1492 = vadd.f32 %v1433, %v1435
      %1493 = vadd.xlane.f32.xlu0 %v1492
      %v1494 = vpop.xlane.xlu0 %1493
      %v1495 = vadd.f32 %v1437, %v1439
      %1496 = vadd.xlane.f32.xlu0 %v1495
      %v1497 = vpop.xlane.xlu0 %1496
      %v1498 = vadd.f32 %v1441, %v1443
      %1499 = vadd.xlane.f32.xlu0 %v1498
      %v1500 = vpop.xlane.xlu0 %1499
      %v1501 = vadd.f32 %v1445, %v1447
      %1502 = vadd.xlane.f32.xlu0 %v1501
      %v1503 = vpop.xlane.xlu0 %1502
      %v1504 = vadd.f32 %v1449, %v1451
      %1505 = vadd.xlane.f32.xlu0 %v1504
      %v1506 = vpop.xlane.xlu0 %1505
      %v1507 = vadd.f32 %v1453, %v1455
      %1508 = vadd.xlane.f32.xlu0 %v1507
      %v1509 = vpop.xlane.xlu0 %1508
      %v1510 = vadd.f32 %v1457, %v1459
      %1511 = vadd.xlane.f32.xlu0 %v1510
      %v1512 = vpop.xlane.xlu0 %1511
      %v1513 = vadd.f32 %v1461, %v1463
      %1514 = vadd.xlane.f32.xlu0 %v1513
      %v1515 = vpop.xlane.xlu0 %1514
      %v1516 = vadd.f32 %v1465, %v1467
      %1517 = vadd.xlane.f32.xlu0 %v1516
      %v1518 = vpop.xlane.xlu0 %1517
      %v1519 = vadd.f32 %v1469, %v1471
      %1520 = vadd.xlane.f32.xlu0 %v1519
      %v1521 = vpop.xlane.xlu0 %1520
      %v1522 = vadd.f32 %v1473, %v1475
      %1523 = vadd.xlane.f32.xlu0 %v1522
      %v1524 = vpop.xlane.xlu0 %1523
      %v1525 = vadd.f32 %v1477, %v1479
      %1526 = vadd.xlane.f32.xlu0 %v1525
      %v1527 = vpop.xlane.xlu0 %1526
      %v1528 = vpack.c.bf16 %v1421, %v1417
      %v1529 = vpack.c.bf16 %v1423, %v1419
      %v1530 = vpack.c.bf16 %v1429, %v1425
      %v1531 = vpack.c.bf16 %v1431, %v1427
      %v1532 = vpack.c.bf16 %v1437, %v1433
      %v1533 = vpack.c.bf16 %v1439, %v1435
      %v1534 = vpack.c.bf16 %v1445, %v1441
      %v1535 = vpack.c.bf16 %v1447, %v1443
      %v1536 = vpack.c.bf16 %v1453, %v1449
      %v1537 = vpack.c.bf16 %v1455, %v1451
      %v1538 = vpack.c.bf16 %v1461, %v1457
      %v1539 = vpack.c.bf16 %v1463, %v1459
      %v1540 = vpack.c.bf16 %v1469, %v1465
      %v1541 = vpack.c.bf16 %v1471, %v1467
      %v1542 = vpack.c.bf16 %v1477, %v1473
      %v1543 = vpack.c.bf16 %v1479, %v1475
      %v1544 = vld [vmem:[#allocation4] sm:$0xff]
      %v1545 = vld [vmem:[#allocation4 + $0x8] sm:$0xff]
      %v1546 = vld [vmem:[#allocation4 + $0x10] sm:$0xff]
      %v1547 = vld [vmem:[#allocation4 + $0x18] sm:$0xff]
      %v1548 = vld [vmem:[#allocation4 + $0x20] sm:$0xff]
      %v1549 = vld [vmem:[#allocation4 + $0x28] sm:$0xff]
      %v1550 = vld [vmem:[#allocation4 + $0x30] sm:$0xff]
      %v1551 = vld [vmem:[#allocation4 + $0x38] sm:$0xff]
      %v1552 = vld [vmem:[#allocation4 + $0x40] sm:$0xff]
      %v1553 = vld [vmem:[#allocation4 + $0x48] sm:$0xff]
      %v1554 = vld [vmem:[#allocation4 + $0x50] sm:$0xff]
      %v1555 = vld [vmem:[#allocation4 + $0x58] sm:$0xff]
      %v1556 = vld [vmem:[#allocation4 + $0x60] sm:$0xff]
      %v1557 = vld [vmem:[#allocation4 + $0x68] sm:$0xff]
      %v1558 = vld [vmem:[#allocation4 + $0x70] sm:$0xff]
      %v1559 = vld [vmem:[#allocation4 + $0x78] sm:$0xff]
      %1560 = vmatprep.subr.bf16.mxu0 0
      %1561 = vmatpush1.bf16.msra.mxu0 %v1544
      %1562 = vmatprep.subr.bf16.mxu0 0
      %1563 = vmatpush1.bf16.msra.mxu0 %v1545
      %1564 = vmatprep.subr.bf16.mxu0 0
      %1565 = vmatpush1.bf16.msra.mxu0 %v1546
      %1566 = vmatprep.subr.bf16.mxu0 0
      %1567 = vmatpush1.bf16.msra.mxu0 %v1547
      %1568 = vmatprep.subr.bf16.mxu0 0
      %1569 = vmatpush1.bf16.msra.mxu0 %v1548
      %1570 = vmatprep.subr.bf16.mxu0 0
      %1571 = vmatpush1.bf16.msra.mxu0 %v1549
      %1572 = vmatprep.subr.bf16.mxu0 0
      %1573 = vmatpush1.bf16.msra.mxu0 %v1550
      %1574 = vmatprep.subr.bf16.mxu0 0
      %1575 = vmatpush1.bf16.msra.mxu0 %v1551
      %1576 = vmatprep.subr.bf16.mxu0 0
      %1577 = vmatpush1.bf16.msra.mxu0 %v1552
      %1578 = vmatprep.subr.bf16.mxu0 0
      %1579 = vmatpush1.bf16.msra.mxu0 %v1553
      %1580 = vmatprep.subr.bf16.mxu0 0
      %1581 = vmatpush1.bf16.msra.mxu0 %v1554
      %1582 = vmatprep.subr.bf16.mxu0 0
      %1583 = vmatpush1.bf16.msra.mxu0 %v1555
      %1584 = vmatprep.subr.bf16.mxu0 0
      %1585 = vmatpush1.bf16.msra.mxu0 %v1556
      %1586 = vmatprep.subr.bf16.mxu0 0
      %1587 = vmatpush1.bf16.msra.mxu0 %v1557
      %1588 = vmatprep.subr.bf16.mxu0 0
      %1589 = vmatpush1.bf16.msra.mxu0 %v1558
      %1590 = vmatprep.subr.bf16.mxu0 0
      %1591 = vmatpush1.bf16.msra.mxu0 %v1559
      %1592 = vmatprep.mubr.bf16.mxu0 %v1529
      %1593 = vmatmul.mubr.bf16.gmra.mrb[0].mxu0 %v1528
      %v1594 = vpop.f32.mrb[0].mxu0
      %v1595 = vadd.f32 0.0, %v1594
      %v1596 = vpop.f32.mrb[0].mxu0
      %v1597 = vpop.f32.mrb[0].mxu0
      %v1598 = vadd.f32 0.0, %v1597
      %v1599 = vpop.f32.mrb[0].mxu0
      %1600 = vmatprep.mubr.bf16.mxu0 %v1531
      %1601 = vmatmul.mubr.bf16.gmra.mrb[0].mxu0 %v1530
      %v1602 = vpop.f32.mrb[0].mxu0
      %v1603 = vadd.f32 0.0, %v1602
      %v1604 = vpop.f32.mrb[0].mxu0
      %v1605 = vpop.f32.mrb[0].mxu0
      %v1606 = vadd.f32 0.0, %v1605
      %v1607 = vpop.f32.mrb[0].mxu0
      %1608 = vmatprep.mubr.bf16.mxu0 %v1533
      %1609 = vmatmul.mubr.bf16.gmra.mrb[0].mxu0 %v1532
      %v1610 = vpop.f32.mrb[0].mxu0
      %v1611 = vadd.f32 0.0, %v1610
      %v1612 = vpop.f32.mrb[0].mxu0
      %v1613 = vpop.f32.mrb[0].mxu0
      %v1614 = vadd.f32 0.0, %v1613
      %v1615 = vpop.f32.mrb[0].mxu0
      %1616 = vmatprep.mubr.bf16.mxu0 %v1535
      %1617 = vmatmul.mubr.bf16.gmra.mrb[0].mxu0 %v1534
      %v1618 = vpop.f32.mrb[0].mxu0
      %v1619 = vadd.f32 0.0, %v1618
      %v1620 = vpop.f32.mrb[0].mxu0
      %v1621 = vpop.f32.mrb[0].mxu0
      %v1622 = vadd.f32 0.0, %v1621
      %v1623 = vpop.f32.mrb[0].mxu0
      %1624 = vmatprep.mubr.bf16.mxu0 %v1537
      %1625 = vmatmul.mubr.bf16.gmra.mrb[0].mxu0 %v1536
      %v1626 = vpop.f32.mrb[0].mxu0
      %v1627 = vadd.f32 0.0, %v1626
      %v1628 = vpop.f32.mrb[0].mxu0
      %v1629 = vpop.f32.mrb[0].mxu0
      %v1630 = vadd.f32 0.0, %v1629
      %v1631 = vpop.f32.mrb[0].mxu0
      %1632 = vmatprep.mubr.bf16.mxu0 %v1539
      %1633 = vmatmul.mubr.bf16.gmra.mrb[0].mxu0 %v1538
      %v1634 = vpop.f32.mrb[0].mxu0
      %v1635 = vadd.f32 0.0, %v1634
      %v1636 = vpop.f32.mrb[0].mxu0
      %v1637 = vpop.f32.mrb[0].mxu0
      %v1638 = vadd.f32 0.0, %v1637
      %v1639 = vpop.f32.mrb[0].mxu0
      %1640 = vmatprep.mubr.bf16.mxu0 %v1541
      %1641 = vmatmul.mubr.bf16.gmra.mrb[0].mxu0 %v1540
      %v1642 = vpop.f32.mrb[0].mxu0
      %v1643 = vadd.f32 0.0, %v1642
      %v1644 = vpop.f32.mrb[0].mxu0
      %v1645 = vpop.f32.mrb[0].mxu0
      %v1646 = vadd.f32 0.0, %v1645
      %v1647 = vpop.f32.mrb[0].mxu0
      %1648 = vmatprep.mubr.bf16.mxu0 %v1543
      %1649 = vmatmul.mubr.bf16.gmra.mrb[0].mxu0 %v1542
      %v1650 = vpop.f32.mrb[0].mxu0
      %v1651 = vadd.f32 0.0, %v1650
      %v1652 = vpop.f32.mrb[0].mxu0
      %v1653 = vpop.f32.mrb[0].mxu0
      %v1654 = vadd.f32 0.0, %v1653
      %v1655 = vpop.f32.mrb[0].mxu0
      %1656 = vdwg.mxu0
      %s1657 = sld [smem:[#allocation5]]
      %v1658 = vrcp.pop %v1482
      %v1659 = vrcp.pop %v1485
      %v1660 = vrcp.pop %v1488
      %v1661 = vrcp.pop %v1491
      %v1662 = vrcp.pop %v1494
      %v1663 = vrcp.pop %v1497
      %v1664 = vrcp.pop %v1500
      %v1665 = vrcp.pop %v1503
      %v1666 = vrcp.pop %v1506
      %v1667 = vrcp.pop %v1509
      %v1668 = vrcp.pop %v1512
      %v1669 = vrcp.pop %v1515
      %v1670 = vrcp.pop %v1518
      %v1671 = vrcp.pop %v1521
      %v1672 = vrcp.pop %v1524
      %v1673 = vrcp.pop %v1527
      %v1674 = vstv %s1657
      %v1675 = vmul.f32 %v1674, %v1658
      %v1676 = vmul.f32 %v1674, %v1659
      %v1677 = vmul.f32 %v1674, %v1660
      %v1678 = vmul.f32 %v1674, %v1661
      %v1679 = vmul.f32 %v1674, %v1662
      %v1680 = vmul.f32 %v1674, %v1663
      %v1681 = vmul.f32 %v1674, %v1664
      %v1682 = vmul.f32 %v1674, %v1665
      %v1683 = vmul.f32 %v1674, %v1666
      %v1684 = vmul.f32 %v1674, %v1667
      %v1685 = vmul.f32 %v1674, %v1668
      %v1686 = vmul.f32 %v1674, %v1669
      %v1687 = vmul.f32 %v1674, %v1670
      %v1688 = vmul.f32 %v1674, %v1671
      %v1689 = vmul.f32 %v1674, %v1672
      %v1690 = vmul.f32 %v1674, %v1673
      %s1691 = sshra.s32 %s1121, 3
      %s1692 = sand.u32 %s1121, 7
      %s1693 = smul.addr %s1691, 4
      %s1694 = scalar_lea.vmem %s319, %s1693
      %v1695 = vld [vmem:[%s1694] sm:$0xf]
      %v1696 = vld [vmem:[%s1694 + $0x4] sm:$0xf]
      %v1697 = vld [vmem:[%s1694 + $0x8] sm:$0xf]
      %v1698 = vld [vmem:[%s1694 + $0xc] sm:$0xf]
      %v1699 = vld [vmem:[%s1694 + $0x10] sm:$0xf]
      %v1700 = vld [vmem:[%s1694 + $0x14] sm:$0xf]
      %v1701 = vld [vmem:[%s1694 + $0x18] sm:$0xf]
      %v1702 = vld [vmem:[%s1694 + $0x1c] sm:$0xf]
      %v1703 = vld [vmem:[%s1694 + $0x20] sm:$0xf]
      %v1704 = vld [vmem:[%s1694 + $0x24] sm:$0xf]
      %v1705 = vld [vmem:[%s1694 + $0x28] sm:$0xf]
      %v1706 = vld [vmem:[%s1694 + $0x2c] sm:$0xf]
      %v1707 = vld [vmem:[%s1694 + $0x30] sm:$0xf]
      %v1708 = vld [vmem:[%s1694 + $0x34] sm:$0xf]
      %v1709 = vld [vmem:[%s1694 + $0x38] sm:$0xf]
      %v1710 = vld [vmem:[%s1694 + $0x3c] sm:$0xf]
      %v1711 = vunpack.c.l.bf16 %v1695
      %v1712 = vunpack.c.l.bf16 %v1696
      %v1713 = vunpack.c.l.bf16 %v1697
      %v1714 = vunpack.c.l.bf16 %v1698
      %v1715 = vunpack.c.l.bf16 %v1699
      %v1716 = vunpack.c.l.bf16 %v1700
      %v1717 = vunpack.c.l.bf16 %v1701
      %v1718 = vunpack.c.l.bf16 %v1702
      %v1719 = vunpack.c.l.bf16 %v1703
      %v1720 = vunpack.c.l.bf16 %v1704
      %v1721 = vunpack.c.l.bf16 %v1705
      %v1722 = vunpack.c.l.bf16 %v1706
      %v1723 = vunpack.c.l.bf16 %v1707
      %v1724 = vunpack.c.l.bf16 %v1708
      %v1725 = vunpack.c.l.bf16 %v1709
      %v1726 = vunpack.c.l.bf16 %v1710
      %v1727 = vmul.f32 %v1675, %v1595
      %v1728 = vmul.f32 %v1676, %v1598
      %v1729 = vmul.f32 %v1677, %v1603
      %v1730 = vmul.f32 %v1678, %v1606
      %v1731 = vmul.f32 %v1679, %v1611
      %v1732 = vmul.f32 %v1680, %v1614
      %v1733 = vmul.f32 %v1681, %v1619
      %v1734 = vmul.f32 %v1682, %v1622
      %v1735 = vmul.f32 %v1683, %v1627
      %v1736 = vmul.f32 %v1684, %v1630
      %v1737 = vmul.f32 %v1685, %v1635
      %v1738 = vmul.f32 %v1686, %v1638
      %v1739 = vmul.f32 %v1687, %v1643
      %v1740 = vmul.f32 %v1688, %v1646
      %v1741 = vmul.f32 %v1689, %v1651
      %v1742 = vmul.f32 %v1690, %v1654
      %v1743 = vadd.f32 %v1727, %v1711
      %v1744 = vadd.f32 %v1728, %v1712
      %v1745 = vadd.f32 %v1729, %v1713
      %v1746 = vadd.f32 %v1730, %v1714
      %v1747 = vadd.f32 %v1731, %v1715
      %v1748 = vadd.f32 %v1732, %v1716
      %v1749 = vadd.f32 %v1733, %v1717
      %v1750 = vadd.f32 %v1734, %v1718
      %v1751 = vadd.f32 %v1735, %v1719
      %v1752 = vadd.f32 %v1736, %v1720
      %v1753 = vadd.f32 %v1737, %v1721
      %v1754 = vadd.f32 %v1738, %v1722
      %v1755 = vadd.f32 %v1739, %v1723
      %v1756 = vadd.f32 %v1740, %v1724
      %v1757 = vadd.f32 %v1741, %v1725
      %v1758 = vadd.f32 %v1742, %v1726
      %vm1759 = vcmask 130048
      %1760 = vst.msk [vmem:[%s328] sm:$0xff] %vm1759, %v1743
      %1761 = vst.msk [vmem:[%s328 + $0x8] sm:$0xff] %vm1759, %v1744
      %1762 = vst.msk [vmem:[%s328 + $0x10] sm:$0xff] %vm1759, %v1745
      %1763 = vst.msk [vmem:[%s328 + $0x18] sm:$0xff] %vm1759, %v1746
      %1764 = vst.msk [vmem:[%s328 + $0x20] sm:$0xff] %vm1759, %v1747
      %1765 = vst.msk [vmem:[%s328 + $0x28] sm:$0xff] %vm1759, %v1748
      %1766 = vst.msk [vmem:[%s328 + $0x30] sm:$0xff] %vm1759, %v1749
      %1767 = vst.msk [vmem:[%s328 + $0x38] sm:$0xff] %vm1759, %v1750
      %1768 = vst.msk [vmem:[%s328 + $0x40] sm:$0xff] %vm1759, %v1751
      %1769 = vst.msk [vmem:[%s328 + $0x48] sm:$0xff] %vm1759, %v1752
      %1770 = vst.msk [vmem:[%s328 + $0x50] sm:$0xff] %vm1759, %v1753
      %1771 = vst.msk [vmem:[%s328 + $0x58] sm:$0xff] %vm1759, %v1754
      %1772 = vst.msk [vmem:[%s328 + $0x60] sm:$0xff] %vm1759, %v1755
      %1773 = vst.msk [vmem:[%s328 + $0x68] sm:$0xff] %vm1759, %v1756
      %1774 = vst.msk [vmem:[%s328 + $0x70] sm:$0xff] %vm1759, %v1757
      %1775 = vst.msk [vmem:[%s328 + $0x78] sm:$0xff] %vm1759, %v1758
      %s1776 = smul.u32 16, %s25
      %p1777 = scmp.lt.s32.totalorder %s24, 1
      %s1778 = scalar_select %p1777, %s24, 1
      %p1779 = scmp.lt.s32.totalorder %s1776, 31
      %s1780 = scalar_select %p1779, %s1776, 31
      %s1781 = smul.addr %s1778, 32
      %s1782 = sadd.s32 %s1780, %s1781
      %s1783 = smul.addr %s1782, 8
      %s1784 = scalar_lea.vmem %s8, %s1783
      // Predicated region
      $region57: #{tpu_custom_call.1} parent=51 // pred_check
        %p1785 = pneg %p225
      $region58: #{tpu_custom_call.1} parent=51 // pred_check_branch
        %1787 = sbr.rel (%p1785) target = $region60
      $region59: #{tpu_custom_call.1} parent=51 // pred_region
        %s1788 = smul.u32 16, %s25
      $region60: #{tpu_custom_call.1} parent=51 // pred_fallthru
        _
    $region52: #{tpu_custom_call.1} parent=5 // pred_fallthru
      _
    %p1789 = scmp.le.s32.totalorder 2, %s15
    // Predicated region
    $region61: #{tpu_custom_call.1} parent=5 // pred_check
      %p1790 = pneg %p1789
    $region62: #{tpu_custom_call.1} parent=5 // pred_check_branch
      %1792 = sbr.rel (%p1790) target = $region64
    $region63: #{tpu_custom_call.1} parent=5 // pred_region
      %s1793 = ssub.s32 %s15, 2
      // Predicated region
      $region65: #{tpu_custom_call.1} parent=63 // pred_check
        %p1794 = pneg %p231
      $region66: #{tpu_custom_call.1} parent=63 // pred_check_branch
        %1796 = sbr.rel (%p1794) target = $region68
      $region67: #{tpu_custom_call.1} parent=63 // pred_region
        %s1797 = smul.u32 16, %s27
        %p1798 = scmp.lt.s32.totalorder %s26, 1
        %s1799 = scalar_select %p1798, %s26, 1
        %p1800 = scmp.lt.s32.totalorder %s1797, 31
        %s1801 = scalar_select %p1800, %s1797, 31
        %s1802 = smul.addr %s1799, 32
        %s1803 = sadd.s32 %s1801, %s1802
        %s1804 = smul.addr %s1803, 8
        %s1805 = scalar_lea.vmem %s8, %s1804
      $region68: #{tpu_custom_call.1} parent=63 // pred_fallthru
        _
    $region64: #{tpu_custom_call.1} parent=5 // pred_fallthru
      _
  $region6: #{tpu_custom_call.1} parent=0 // loop_footer
    %s19 = sadd.s32 1, %s15
  $region7: #{tpu_custom_call.1} parent=0 // loop_footer_branch
    %14 = sbr.rel target = $region3
  $region8: #{tpu_custom_call.1} parent=0 // loop_exit
    _

</llo_original>
